<compile_context>
chip_gen: v7x
topology: tpu7x:2x2x1
jax: 0.10.0
libtpu: 0.0.40
codegen_flags: <defaults>
</compile_context>

<pallas_src>
import functools

import jax
import jax.numpy as jnp
from jax.experimental import pallas as pl
from jax.experimental.pallas import tpu as pltpu

TAU = 0.05          # self.tau in the torch module
INV_TAU = 1.0 / TAU


# --------------------------------------------------------------------------- #
# Tiling helpers
# --------------------------------------------------------------------------- #
def _round_up(x, m):
    return ((x + m - 1) // m) * m


def _pick_batch_tile(b_pad, bt_max):
    """b_pad is a multiple of 16.  Prefer >= 2 batch tiles (multiple-of-16 rows)
    so the "parallel" batch grid axis can shard across the two TensorCores on
    v7x; fall back to a single full-batch tile for small batches."""
    bt_max = max(16, (bt_max // 16) * 16)
    if b_pad < 32:
        return b_pad
    t = max(16, min(bt_max, ((b_pad // 2) // 16) * 16))
    while t >= 16:
        if b_pad % t == 0:
            return t
        t -= 16
    return 16  # unreachable: 16 always divides b_pad


# --------------------------------------------------------------------------- #
# Fused encoder + reparameterization + decoder + GMM-mask kernel
# --------------------------------------------------------------------------- #
def _fused_net_kernel(x_ref, w_ref, b_ref, eps_ref, dw_ref, db_ref,
                      res_ref, cprop_ref, cmean_ref, cstd_ref,
                      out_ref, stats_ref, mask_ref,
                      acc_ref):
    """One (batch_tile, k_tile) grid step.

    Accumulates the bf16 encoder matmul over the K (flattened-pixel) grid axis
    into an f32 VMEM scratch; on the last K step it adds the bias once, applies
    the reparameterization trick, runs the decoder matmul, and writes the GMM
    soft-assignment mask.
    """
    k = pl.program_id(1)
    nk = pl.num_programs(1)

    @pl.when(k == 0)
    def _init():
        acc_ref[...] = jnp.zeros_like(acc_ref)

    # bf16 x bf16 -> f32 MXU accumulation of the merged (mean|std) encoder matmul.
    acc_ref[...] += jnp.dot(x_ref[...], w_ref[...],
                            preferred_element_type=jnp.float32)

    @pl.when(k == nk - 1)
    def _finalize():
        latent_dim = eps_ref.shape[1]
        enc = acc_ref[...] + b_ref[...]                  # (bt, 2L); bias added once
        mu = enc[:, :latent_dim]                          # static lane slices
        sd = enc[:, latent_dim:]
        z = sd * eps_ref[...] + mu                        # reparameterization trick

        # Packed lane-contiguous stats output: [ mu | std | z ] in one block.
        stats_ref[:, :latent_dim] = mu
        stats_ref[:, latent_dim:2 * latent_dim] = sd
        stats_ref[:, 2 * latent_dim:] = z

        out_ref[...] = (jnp.dot(z, dw_ref[...],
                                preferred_element_type=jnp.float32)
                        + db_ref[...])

        # --- compute_mask: GMM log-density + double softmax, (R, D) layout ----
        # Recomputed identically for every batch tile (tiny), each tile writes
        # its own mask copy -> safe under megacore batch sharding.
        p = cprop_ref[...]                                # (1, D)
        p = p - jnp.max(p, axis=1, keepdims=True)
        log_prop = p - jnp.log(jnp.sum(jnp.exp(p), axis=1, keepdims=True))
        std = cstd_ref[...]                               # (1, D)
        inv_var = pl.reciprocal(std * std)                # D reciprocals, hoisted
        diff = res_ref[...] - cmean_ref[...]              # (R, D)
        logits = (-0.5 * diff * diff * inv_var + log_prop) * INV_TAU
        logits = logits - jnp.max(logits, axis=1, keepdims=True)
        e = jnp.exp(logits)
        denom = jnp.sum(e, axis=1, keepdims=True)         # (R, 1)
        # EUP approximate reciprocal + one Newton step (avoids a VPU divide).
        r = pl.reciprocal(denom, approx=True)
        r = r * (2.0 - denom * r)
        mask_ref[...] = e * r


def fused_forward(flat_images, enc_w, enc_b, eps, dec_w, dec_b,
                  residues_col, c_prop, c_mean, c_std,
                  *, bt_max=256, kt_max=2048):
    """Fused encoder matmul + reparam + decoder matmul + GMM mask.

    Returns (decoder_out (B, OUT), stats (B, 3L) = [mu|std|z], mask (R, D)).
    """
    B, K = flat_images.shape
    L2 = enc_w.shape[1]            # 2 * latent_dim
    L = L2 // 2
    OUT = dec_w.shape[1]
    R = residues_col.shape[0]
    D = c_prop.shape[1]

    # --- tile selection & zero-padding (always 128-aligned, pipelined tiles) --
    kt_max = max(128, (kt_max // 128) * 128)
    kt = min(kt_max, _round_up(K, 128))
    k_pad = _round_up(K, kt)
    b_pad = _round_up(B, 16)                  # bf16 sublane packing
    bt = _pick_batch_tile(b_pad, bt_max)
    grid = (b_pad // bt, k_pad // kt)

    # bf16 stream of the bandwidth-dominant operands; zero pads are exact
    # (padded image columns / weight rows contribute nothing to the matmul).
    x = flat_images.astype(jnp.bfloat16)
    w = enc_w.astype(jnp.bfloat16)
    if k_pad != K or b_pad != B:
        x = jnp.pad(x, ((0, b_pad - B), (0, k_pad - K)))
    if k_pad != K:
        w = jnp.pad(w, ((0, k_pad - K), (0, 0)))
    if b_pad != B:
        eps = jnp.pad(eps, ((0, b_pad - B), (0, 0)))

    # Scoped-VMEM limit derived from the double-buffered working set (capped at
    # the v7x 64 MiB physical VMEM; v5e's 16 MiB scoped default needs the raise).
    vmem_bytes = (
        2 * bt * kt * 2                                   # x tiles (bf16)
        + 2 * kt * L2 * 2                                 # encoder W tiles (bf16)
        + 2 * (L2 + bt * L + L * OUT + OUT + R + 3 * D) * 4   # small f32 inputs
        + 2 * (bt * OUT + bt * 3 * L + R * D) * 4              # outputs
        + bt * L2 * 4                                     # accumulator scratch
    )
    vmem_limit = int(min(64 * 1024 * 1024, max(32 * 1024 * 1024, 2 * vmem_bytes)))

    grid_spec = pltpu.PrefetchScalarGridSpec(
        num_scalar_prefetch=0,
        grid=grid,
        in_specs=[
            pl.BlockSpec((bt, kt), lambda i, k: (i, k)),       # flattened images
            pl.BlockSpec((kt, L2), lambda i, k: (k, 0)),       # encoder W (merged)
            pl.BlockSpec((1, L2), lambda i, k: (0, 0)),        # encoder bias
            pl.BlockSpec((bt, L), lambda i, k: (i, 0)),        # eps
            pl.BlockSpec((L, OUT), lambda i, k: (0, 0)),       # decoder W
            pl.BlockSpec((1, OUT), lambda i, k: (0, 0)),       # decoder bias
            pl.BlockSpec((R, 1), lambda i, k: (0, 0)),         # residue index column
            pl.BlockSpec((1, D), lambda i, k: (0, 0)),         # sampled proportions
            pl.BlockSpec((1, D), lambda i, k: (0, 0)),         # sampled means
            pl.BlockSpec((1, D), lambda i, k: (0, 0)),         # sampled stds
        ],
        out_specs=[
            pl.BlockSpec((bt, OUT), lambda i, k: (i, 0)),      # decoder output
            pl.BlockSpec((bt, 3 * L), lambda i, k: (i, 0)),    # [mu | std | z]
            pl.BlockSpec((None, R, D), lambda i, k: (i, 0, 0)),  # mask per batch tile
        ],
        scratch_shapes=[pltpu.VMEM((bt, L2), jnp.float32)],    # merged accumulator
    )

    out, stats, mask = pl.pallas_call(
        _fused_net_kernel,
        out_shape=(
            jax.ShapeDtypeStruct((b_pad, OUT), jnp.float32),
            jax.ShapeDtypeStruct((b_pad, 3 * L), jnp.float32),
            jax.ShapeDtypeStruct((grid[0], R, D), jnp.float32),
        ),
        grid_spec=grid_spec,
        compiler_params=pltpu.CompilerParams(
            # batch axis shards across the 2 TensorCores on v7x; K is a reduction.
            dimension_semantics=("parallel", "arbitrary"),
            vmem_limit_bytes=vmem_limit,
        ),
    )(x, w, enc_b, eps, dec_w, dec_b, residues_col, c_prop, c_mean, c_std)

    # All batch tiles wrote identical mask copies; take the first (cheap view slice).
    return out[:B], stats[:B], mask[0]


# --------------------------------------------------------------------------- #
# Module wrapper
# --------------------------------------------------------------------------- #
class NetPallas:
    """JAX/Pallas counterpart of the torch `Net` (use_encoder=True path)."""

    def __init__(self, N_residues, N_domains, latent_dim, N_pix, key):
        assert N_domains == 4, "cluster parameters in the reference module are hard-coded to 4 domains"
        self.N_residues = N_residues
        self.N_domains = N_domains
        self.latent_dim = latent_dim
        self.N_pix = N_pix

        k_enc, k_dec = jax.random.split(key, 2)
        in_dim = N_pix * N_pix

        # Deterministic synthetic encoder / decoder parameters (the torch module
        # receives opaque encoder/decoder submodules; modeled as single Linears).
        self.enc_w = 0.02 * jax.random.normal(k_enc, (in_dim, 2 * latent_dim), jnp.float32)
        self.enc_b = jnp.zeros((1, 2 * latent_dim), jnp.float32)
        self.dec_w = 0.02 * jax.random.normal(k_dec, (latent_dim, N_residues * 3), jnp.float32)
        self.dec_b = jnp.zeros((1, N_residues * 3), jnp.float32)

        # Cluster (GMM mask) parameters — same constants as the torch __init__.
        self.residues_col = jnp.arange(0, N_residues, dtype=jnp.float32)[:, None]   # (R, 1)
        self.cluster_means_mean = jnp.array([[160.0, 550.0, 800.0, 1300.0]], jnp.float32)
        self.cluster_means_std = jnp.full((1, 4), 10.0, jnp.float32)
        self.cluster_std_mean = jnp.full((1, 4), 100.0, jnp.float32)
        self.cluster_std_std = jnp.full((1, 4), 10.0, jnp.float32)
        self.cluster_proportions_mean = jnp.zeros((1, 4), jnp.float32)
        self.cluster_proportions_std = jnp.ones((1, 4), jnp.float32)

        # TODO(synk): latent_mean/latent_std tables (100000, latent_dim) are only used
        # when use_encoder=False; that path (table lookup + reparam) is not implemented.
        # TODO(synk): renderer / local_frame are unused in the reference forward().

    def forward(self, indexes, images, key, *, bt_max=256, kt_max=2048):
        del indexes  # unused when use_encoder=True
        B = images.shape[0]
        k_prop, k_mean, k_std, k_eps = jax.random.split(key, 4)

        # compute_mask sampling of the 4 cluster params is glue; the (R, D)
        # log-density + double softmax hot path runs fused inside the kernel.
        c_prop = (jax.random.normal(k_prop, (1, 4), jnp.float32)
                  * self.cluster_proportions_std + self.cluster_proportions_mean)
        c_mean = (jax.random.normal(k_mean, (1, 4), jnp.float32)
                  * self.cluster_means_std + self.cluster_means_mean)
        c_std = (jax.random.normal(k_std, (1, 4), jnp.float32)
                 * self.cluster_std_std + self.cluster_std_mean)
        # TODO(synk): eps could be generated in-kernel (pltpu.prng_seed +
        # pltpu.prng_random_bits) to drop this tiny input DMA; kept host-side so
        # the pure-JAX reference check can reproduce the exact draw.
        eps = jax.random.normal(k_eps, (B, self.latent_dim), jnp.float32)

        flat = images.reshape(B, self.N_pix * self.N_pix)
        out_flat, stats, weights = fused_forward(
            flat, self.enc_w, self.enc_b, eps, self.dec_w, self.dec_b,
            self.residues_col, c_prop, c_mean, c_std,
            bt_max=bt_max, kt_max=kt_max)

        L = self.latent_dim
        latent_mean = stats[:, :L]
        latent_std = stats[:, L:2 * L]
        latent_vars = stats[:, 2 * L:]
        output = out_flat.reshape(B, self.N_residues, 3)
        return output, weights, latent_vars, latent_mean, latent_std


# --------------------------------------------------------------------------- #
# Demo / correctness check
# --------------------------------------------------------------------------- #
if __name__ == "__main__":
    key = jax.random.PRNGKey(0)
    k_params, k_images, k_fwd = jax.random.split(key, 3)

    B = 2
    N_pix = 16
    N_residues = 128
    N_domains = 4
    latent_dim = 8

    net = NetPallas(N_residues, N_domains, latent_dim, N_pix, k_params)

    images = jax.random.normal(k_images, (B, N_pix, N_pix), jnp.float32)
    indexes = jnp.arange(B, dtype=jnp.int32)

    # kt_max=128 forces a 2-step K reduction at this demo size (K=256) so the
    # accumulator / pl.when init-finalize path is exercised; real sizes use the
    # default kt_max=2048.
    output, weights, z, mu, std = net.forward(indexes, images, k_fwd, kt_max=128)
    jax.block_until_ready((output, weights, z, mu, std))

    # ---- shape checks -------------------------------------------------------
    assert output.shape == (B, N_residues, 3)
    assert weights.shape == (N_residues, N_domains)
    assert z.shape == (B, latent_dim)
    assert mu.shape == (B, latent_dim)
    assert std.shape == (B, latent_dim)

    # ---- pure-JAX reference (same RNG draws, same bf16 input rounding) -------
    k_prop, k_mean, k_std, k_eps = jax.random.split(k_fwd, 4)
    c_prop = (jax.random.normal(k_prop, (1, 4), jnp.float32)
              * net.cluster_proportions_std + net.cluster_proportions_mean)
    c_mean = (jax.random.normal(k_mean, (1, 4), jnp.float32)
              * net.cluster_means_std + net.cluster_means_mean)
    c_std = (jax.random.normal(k_std, (1, 4), jnp.float32)
             * net.cluster_std_std + net.cluster_std_mean)
    eps = jax.random.normal(k_eps, (B, latent_dim), jnp.float32)

    dot_hi = functools.partial(jnp.dot, precision=jax.lax.Precision.HIGHEST)
    flat = images.reshape(B, N_pix * N_pix)
    flat_bf = flat.astype(jnp.bfloat16).astype(jnp.float32)
    encw_bf = net.enc_w.astype(jnp.bfloat16).astype(jnp.float32)
    enc_ref = dot_hi(flat_bf, encw_bf) + net.enc_b
    mu_ref = enc_ref[:, :latent_dim]
    sd_ref = enc_ref[:, latent_dim:]
    z_ref = sd_ref * eps + mu_ref
    out_ref = (dot_hi(z_ref, net.dec_w) + net.dec_b).reshape(B, N_residues, 3)

    res_col = jnp.arange(N_residues, dtype=jnp.float32)[:, None]
    proportions = jax.nn.softmax(c_prop, axis=1)
    log_num = -0.5 * (res_col - c_mean) ** 2 / c_std ** 2 + jnp.log(proportions)
    w_ref = jax.nn.softmax(log_num / TAU, axis=1)

    assert jnp.allclose(mu, mu_ref, atol=5e-3, rtol=1e-2), "latent_mean mismatch"
    assert jnp.allclose(std, sd_ref, atol=5e-3, rtol=1e-2), "latent_std mismatch"
    assert jnp.allclose(z, z_ref, atol=5e-3, rtol=1e-2), "latent samples mismatch"
    assert jnp.allclose(output, out_ref, atol=5e-3, rtol=1e-2), "decoder output mismatch"
    assert jnp.allclose(weights, w_ref, atol=5e-3), "mask mismatch"
    assert jnp.allclose(jnp.sum(weights, axis=1), 1.0, atol=1e-3), "mask rows must sum to 1"

    print("KERNEL_OK")
</pallas_src>

<mosaic_0001>
module attributes {stable_mosaic.version = 11 : i64} {
  func.func @_fused_net_kernel(%arg0: i32, %arg1: i32, %arg2: memref<16x128xbf16, #tpu.memory_space<vmem>>, %arg3: memref<128x16xbf16, #tpu.memory_space<vmem>>, %arg4: memref<1x16xf32, #tpu.memory_space<vmem>>, %arg5: memref<16x8xf32, #tpu.memory_space<vmem>>, %arg6: memref<8x384xf32, #tpu.memory_space<vmem>>, %arg7: memref<1x384xf32, #tpu.memory_space<vmem>>, %arg8: memref<128x1xf32, #tpu.memory_space<vmem>>, %arg9: memref<1x4xf32, #tpu.memory_space<vmem>>, %arg10: memref<1x4xf32, #tpu.memory_space<vmem>>, %arg11: memref<1x4xf32, #tpu.memory_space<vmem>>, %arg12: memref<16x384xf32, #tpu.memory_space<vmem>>, %arg13: memref<16x24xf32, #tpu.memory_space<vmem>>, %arg14: memref<1x128x4xf32, #tpu.memory_space<vmem>>, %arg15: memref<16x16xf32, #tpu.memory_space<vmem>>) attributes {dimension_semantics = [#tpu.dimension_semantics<parallel>, #tpu.dimension_semantics<arbitrary>], iteration_bounds = array<i64: 1, 2>, scalar_prefetch = 0 : i64, scratch_operands = 1 : i64, tpu.core_type = #tpu.core_type<tc>, window_params = [{transform_indices = @transform_0, window_bounds = array<i64: 16, 128>}, {transform_indices = @transform_1, window_bounds = array<i64: 128, 16>}, {pipeline_mode = #tpu.pipeline_mode<synchronous>, transform_indices = @transform_2, window_bounds = array<i64: 1, 16>}, {transform_indices = @transform_3, window_bounds = array<i64: 16, 8>}, {pipeline_mode = #tpu.pipeline_mode<synchronous>, transform_indices = @transform_4, window_bounds = array<i64: 8, 384>}, {pipeline_mode = #tpu.pipeline_mode<synchronous>, transform_indices = @transform_5, window_bounds = array<i64: 1, 384>}, {pipeline_mode = #tpu.pipeline_mode<synchronous>, transform_indices = @transform_6, window_bounds = array<i64: 128, 1>}, {pipeline_mode = #tpu.pipeline_mode<synchronous>, transform_indices = @transform_7, window_bounds = array<i64: 1, 4>}, {pipeline_mode = #tpu.pipeline_mode<synchronous>, transform_indices = @transform_8, window_bounds = array<i64: 1, 4>}, {pipeline_mode = #tpu.pipeline_mode<synchronous>, transform_indices = @transform_9, window_bounds = array<i64: 1, 4>}, {transform_indices = @transform_10, window_bounds = array<i64: 16, 384>}, {transform_indices = @transform_11, window_bounds = array<i64: 16, 24>}, {transform_indices = @transform_12, window_bounds = array<i64: 1, 128, 4>}]} {
    %c0_i32 = arith.constant 0 : i32
    %0 = arith.cmpi eq, %arg1, %c0_i32 : i32
    %1 = arith.extui %0 : i1 to i32
    %c0_i32_0 = arith.constant 0 : i32
    %2 = arith.cmpi ne, %1, %c0_i32_0 : i32
    scf.if %2 {
      %cst_9 = arith.constant 0.000000e+00 : f32
      %12 = vector.broadcast %cst_9 : f32 to vector<16x16xf32>
      %c0_10 = arith.constant 0 : index
      %c0_11 = arith.constant 0 : index
      %13 = vector.load %arg15[%c0_10, %c0_11] : memref<16x16xf32, #tpu.memory_space<vmem>>, vector<16x16xf32>
      tpu.vector_store %arg15[%c0_10, %c0_11], %12 {strides = array<i32>} : memref<16x16xf32, #tpu.memory_space<vmem>>, vector<16x16xf32>,
    } else {
    }
    %c0 = arith.constant 0 : index
    %c0_1 = arith.constant 0 : index
    %3 = vector.load %arg15[%c0, %c0_1] : memref<16x16xf32, #tpu.memory_space<vmem>>, vector<16x16xf32>
    %c0_2 = arith.constant 0 : index
    %c0_3 = arith.constant 0 : index
    %4 = vector.load %arg2[%c0_2, %c0_3] : memref<16x128xbf16, #tpu.memory_space<vmem>>, vector<16x128xbf16>
    %c0_4 = arith.constant 0 : index
    %c0_5 = arith.constant 0 : index
    %5 = vector.load %arg3[%c0_4, %c0_5] : memref<128x16xbf16, #tpu.memory_space<vmem>>, vector<128x16xbf16>
    %cst = arith.constant dense<0.000000e+00> : vector<16x16xf32>
    %6 = tpu.matmul %4, %5, %cst {dimension_numbers = #tpu.dot_dimension_numbers<[1], [0], [0], [1], [0, 0, 1, 1], [], []>} : vector<16x128xbf16>, vector<128x16xbf16>, vector<16x16xf32> -> vector<16x16xf32>
    %7 = arith.addf %3, %6 : vector<16x16xf32>
    %c0_6 = arith.constant 0 : index
    %c0_7 = arith.constant 0 : index
    %8 = vector.load %arg15[%c0_6, %c0_7] : memref<16x16xf32, #tpu.memory_space<vmem>>, vector<16x16xf32>
    tpu.vector_store %arg15[%c0_6, %c0_7], %7 {strides = array<i32>} : memref<16x16xf32, #tpu.memory_space<vmem>>, vector<16x16xf32>,
    %c1_i32 = arith.constant 1 : i32
    %9 = arith.cmpi eq, %arg1, %c1_i32 : i32
    %10 = arith.extui %9 : i1 to i32
    %c0_i32_8 = arith.constant 0 : i32
    %11 = arith.cmpi ne, %10, %c0_i32_8 : i32
    scf.if %11 {
      %c0_9 = arith.constant 0 : index
      %c0_10 = arith.constant 0 : index
      %12 = vector.load %arg15[%c0_9, %c0_10] : memref<16x16xf32, #tpu.memory_space<vmem>>, vector<16x16xf32>
      %c0_11 = arith.constant 0 : index
      %c0_12 = arith.constant 0 : index
      %13 = vector.load %arg4[%c0_11, %c0_12] : memref<1x16xf32, #tpu.memory_space<vmem>>, vector<1x16xf32>
      %14 = vector.broadcast %13 : vector<1x16xf32> to vector<16x16xf32>
      %15 = arith.addf %12, %14 : vector<16x16xf32>
      %16 = vector.extract_strided_slice %15 {offsets = [0, 0], sizes = [16, 8], strides = [1, 1]} : vector<16x16xf32> to vector<16x8xf32>
      %17 = vector.extract_strided_slice %15 {offsets = [0, 8], sizes = [16, 8], strides = [1, 1]} : vector<16x16xf32> to vector<16x8xf32>
      %c0_13 = arith.constant 0 : index
      %c0_14 = arith.constant 0 : index
      %18 = vector.load %arg5[%c0_13, %c0_14] : memref<16x8xf32, #tpu.memory_space<vmem>>, vector<16x8xf32>
      %19 = arith.mulf %17, %18 : vector<16x8xf32>
      %20 = arith.addf %19, %16 : vector<16x8xf32>
      %c0_15 = arith.constant 0 : index
      %c0_16 = arith.constant 0 : index
      %21 = vector.load %arg13[%c0_15, %c0_16] : memref<16x24xf32, #tpu.memory_space<vmem>>, vector<16x8xf32>
      tpu.vector_store %arg13[%c0_15, %c0_16], %16 {strides = array<i32>} : memref<16x24xf32, #tpu.memory_space<vmem>>, vector<16x8xf32>,
      %c0_17 = arith.constant 0 : index
      %c8 = arith.constant 8 : index
      %22 = vector.load %arg13[%c0_17, %c8] : memref<16x24xf32, #tpu.memory_space<vmem>>, vector<16x8xf32>
      tpu.vector_store %arg13[%c0_17, %c8], %17 {strides = array<i32>} : memref<16x24xf32, #tpu.memory_space<vmem>>, vector<16x8xf32>,
      %c0_18 = arith.constant 0 : index
      %c16 = arith.constant 16 : index
      %23 = vector.load %arg13[%c0_18, %c16] : memref<16x24xf32, #tpu.memory_space<vmem>>, vector<16x8xf32>
      tpu.vector_store %arg13[%c0_18, %c16], %20 {strides = array<i32>} : memref<16x24xf32, #tpu.memory_space<vmem>>, vector<16x8xf32>,
      %c0_19 = arith.constant 0 : index
      %c0_20 = arith.constant 0 : index
      %24 = vector.load %arg6[%c0_19, %c0_20] : memref<8x384xf32, #tpu.memory_space<vmem>>, vector<8x384xf32>
      %cst_21 = arith.constant dense<0.000000e+00> : vector<16x384xf32>
      %25 = tpu.matmul %20, %24, %cst_21 {dimension_numbers = #tpu.dot_dimension_numbers<[1], [0], [0], [1], [0, 0, 1, 1], [], []>} : vector<16x8xf32>, vector<8x384xf32>, vector<16x384xf32> -> vector<16x384xf32>
      %c0_22 = arith.constant 0 : index
      %c0_23 = arith.constant 0 : index
      %26 = vector.load %arg7[%c0_22, %c0_23] : memref<1x384xf32, #tpu.memory_space<vmem>>, vector<1x384xf32>
      %27 = vector.broadcast %26 : vector<1x384xf32> to vector<16x384xf32>
      %28 = arith.addf %25, %27 : vector<16x384xf32>
      %c0_24 = arith.constant 0 : index
      %c0_25 = arith.constant 0 : index
      %29 = vector.load %arg12[%c0_24, %c0_25] : memref<16x384xf32, #tpu.memory_space<vmem>>, vector<16x384xf32>
      tpu.vector_store %arg12[%c0_24, %c0_25], %28 {strides = array<i32>} : memref<16x384xf32, #tpu.memory_space<vmem>>, vector<16x384xf32>,
      %c0_26 = arith.constant 0 : index
      %c0_27 = arith.constant 0 : index
      %30 = vector.load %arg9[%c0_26, %c0_27] : memref<1x4xf32, #tpu.memory_space<vmem>>, vector<1x4xf32>
      %cst_28 = arith.constant dense<0xFF800000> : vector<1xf32>
      %31 = vector.multi_reduction <maximumf>, %30, %cst_28 [1] : vector<1x4xf32> to vector<1xf32>
      %32 = vector.shape_cast %31 : vector<1xf32> to vector<1x1xf32>
      %33 = vector.broadcast %32 : vector<1x1xf32> to vector<1x4xf32>
      %34 = arith.subf %30, %33 : vector<1x4xf32>
      %35 = math.exp %34 : vector<1x4xf32>
      %cst_29 = arith.constant dense<0.000000e+00> : vector<1xf32>
      %36 = vector.multi_reduction <add>, %35, %cst_29 [1] : vector<1x4xf32> to vector<1xf32>
      %37 = vector.shape_cast %36 : vector<1xf32> to vector<1x1xf32>
      %38 = math.log %37 : vector<1x1xf32>
      %39 = vector.broadcast %38 : vector<1x1xf32> to vector<1x4xf32>
      %40 = arith.subf %34, %39 : vector<1x4xf32>
      %c0_30 = arith.constant 0 : index
      %c0_31 = arith.constant 0 : index
      %41 = vector.load %arg11[%c0_30, %c0_31] : memref<1x4xf32, #tpu.memory_space<vmem>>, vector<1x4xf32>
      %42 = arith.mulf %41, %41 : vector<1x4xf32>
      %43 = tpu.reciprocal %42 : vector<1x4xf32> -> vector<1x4xf32>
      %c0_32 = arith.constant 0 : index
      %c0_33 = arith.constant 0 : index
      %44 = vector.load %arg8[%c0_32, %c0_33] : memref<128x1xf32, #tpu.memory_space<vmem>>, vector<128x1xf32>
      %c0_34 = arith.constant 0 : index
      %c0_35 = arith.constant 0 : index
      %45 = vector.load %arg10[%c0_34, %c0_35] : memref<1x4xf32, #tpu.memory_space<vmem>>, vector<1x4xf32>
      %46 = vector.broadcast %44 : vector<128x1xf32> to vector<128x4xf32>
      %47 = vector.broadcast %45 : vector<1x4xf32> to vector<128x4xf32>
      %48 = arith.subf %46, %47 : vector<128x4xf32>
      %cst_36 = arith.constant -5.000000e-01 : f32
      %49 = vector.broadcast %cst_36 : f32 to vector<128x4xf32>
      %50 = arith.mulf %49, %48 : vector<128x4xf32>
      %51 = arith.mulf %50, %48 : vector<128x4xf32>
      %52 = vector.broadcast %43 : vector<1x4xf32> to vector<128x4xf32>
      %53 = arith.mulf %51, %52 : vector<128x4xf32>
      %54 = vector.broadcast %40 : vector<1x4xf32> to vector<128x4xf32>
      %55 = arith.addf %53, %54 : vector<128x4xf32>
      %cst_37 = arith.constant 2.000000e+01 : f32
      %56 = vector.broadcast %cst_37 : f32 to vector<128x4xf32>
      %57 = arith.mulf %55, %56 : vector<128x4xf32>
      %cst_38 = arith.constant dense<0xFF800000> : vector<128xf32>
      %58 = vector.multi_reduction <maximumf>, %57, %cst_38 [1] : vector<128x4xf32> to vector<128xf32>
      %59 = vector.shape_cast %58 : vector<128xf32> to vector<128x1xf32>
      %60 = vector.broadcast %59 : vector<128x1xf32> to vector<128x4xf32>
      %61 = arith.subf %57, %60 : vector<128x4xf32>
      %62 = math.exp %61 : vector<128x4xf32>
      %cst_39 = arith.constant dense<0.000000e+00> : vector<128xf32>
      %63 = vector.multi_reduction <add>, %62, %cst_39 [1] : vector<128x4xf32> to vector<128xf32>
      %64 = vector.shape_cast %63 : vector<128xf32> to vector<128x1xf32>
      %65 = tpu.reciprocal %64 {approx = true} : vector<128x1xf32> -> vector<128x1xf32>
      %66 = arith.mulf %64, %65 : vector<128x1xf32>
      %cst_40 = arith.constant 2.000000e+00 : f32
      %67 = vector.broadcast %cst_40 : f32 to vector<128x1xf32>
      %68 = arith.subf %67, %66 : vector<128x1xf32>
      %69 = arith.mulf %65, %68 : vector<128x1xf32>
      %70 = vector.broadcast %69 : vector<128x1xf32> to vector<128x4xf32>
      %71 = arith.mulf %62, %70 : vector<128x4xf32>
      %c0_41 = arith.constant 0 : index
      %c0_42 = arith.constant 0 : index
      %c0_43 = arith.constant 0 : index
      %72 = vector.load %arg14[%c0_41, %c0_42, %c0_43] : memref<1x128x4xf32, #tpu.memory_space<vmem>>, vector<1x128x4xf32>
      %73 = vector.shape_cast %72 : vector<1x128x4xf32> to vector<128x4xf32>
      %74 = vector.shape_cast %71 : vector<128x4xf32> to vector<1x128x4xf32>
      tpu.vector_store %arg14[%c0_41, %c0_42, %c0_43], %74 {strides = array<i32>} : memref<1x128x4xf32, #tpu.memory_space<vmem>>, vector<1x128x4xf32>,
    } else {
    }
    return
  }
  func.func @transform_0(%arg0: i32, %arg1: i32) -> (i32, i32) {
    %c0_i32 = arith.constant 0 : i32
    return %arg0, %arg1 : i32, i32
  }
  func.func @transform_1(%arg0: i32, %arg1: i32) -> (i32, i32) {
    %c0_i32 = arith.constant 0 : i32
    %c0_i32_0 = arith.constant 0 : i32
    return %arg1, %c0_i32 : i32, i32
  }
  func.func @transform_2(%arg0: i32, %arg1: i32) -> (i32, i32) {
    %c0_i32 = arith.constant 0 : i32
    %c0_i32_0 = arith.constant 0 : i32
    %c0_i32_1 = arith.constant 0 : i32
    return %c0_i32, %c0_i32_0 : i32, i32
  }
  func.func @transform_3(%arg0: i32, %arg1: i32) -> (i32, i32) {
    %c0_i32 = arith.constant 0 : i32
    %c0_i32_0 = arith.constant 0 : i32
    return %arg0, %c0_i32 : i32, i32
  }
  func.func @transform_4(%arg0: i32, %arg1: i32) -> (i32, i32) {
    %c0_i32 = arith.constant 0 : i32
    %c0_i32_0 = arith.constant 0 : i32
    %c0_i32_1 = arith.constant 0 : i32
    return %c0_i32, %c0_i32_0 : i32, i32
  }
  func.func @transform_5(%arg0: i32, %arg1: i32) -> (i32, i32) {
    %c0_i32 = arith.constant 0 : i32
    %c0_i32_0 = arith.constant 0 : i32
    %c0_i32_1 = arith.constant 0 : i32
    return %c0_i32, %c0_i32_0 : i32, i32
  }
  func.func @transform_6(%arg0: i32, %arg1: i32) -> (i32, i32) {
    %c0_i32 = arith.constant 0 : i32
    %c0_i32_0 = arith.constant 0 : i32
    %c0_i32_1 = arith.constant 0 : i32
    return %c0_i32, %c0_i32_0 : i32, i32
  }
  func.func @transform_7(%arg0: i32, %arg1: i32) -> (i32, i32) {
    %c0_i32 = arith.constant 0 : i32
    %c0_i32_0 = arith.constant 0 : i32
    %c0_i32_1 = arith.constant 0 : i32
    return %c0_i32, %c0_i32_0 : i32, i32
  }
  func.func @transform_8(%arg0: i32, %arg1: i32) -> (i32, i32) {
    %c0_i32 = arith.constant 0 : i32
    %c0_i32_0 = arith.constant 0 : i32
    %c0_i32_1 = arith.constant 0 : i32
    return %c0_i32, %c0_i32_0 : i32, i32
  }
  func.func @transform_9(%arg0: i32, %arg1: i32) -> (i32, i32) {
    %c0_i32 = arith.constant 0 : i32
    %c0_i32_0 = arith.constant 0 : i32
    %c0_i32_1 = arith.constant 0 : i32
    return %c0_i32, %c0_i32_0 : i32, i32
  }
  func.func @transform_10(%arg0: i32, %arg1: i32) -> (i32, i32) {
    %c0_i32 = arith.constant 0 : i32
    %c0_i32_0 = arith.constant 0 : i32
    return %arg0, %c0_i32 : i32, i32
  }
  func.func @transform_11(%arg0: i32, %arg1: i32) -> (i32, i32) {
    %c0_i32 = arith.constant 0 : i32
    %c0_i32_0 = arith.constant 0 : i32
    return %arg0, %c0_i32 : i32, i32
  }
  func.func @transform_12(%arg0: i32, %arg1: i32) -> (i32, i32, i32) {
    %c0_i32 = arith.constant 0 : i32
    %c0_i32_0 = arith.constant 0 : i32
    %c0_i32_1 = arith.constant 0 : i32
    return %arg0, %c0_i32, %c0_i32_0 : i32, i32, i32
  }
}

</mosaic_0001>

<llo_original>
// kernel: tpu_custom_call.1
$region0: #{tpu_custom_call.1}
  #allocation0 [shape = 'u32[]', space=smem, size = 0x4, offset = 0x4, fixed_abs, tag = 'smem constant byte address 0x4 - core index']
  #allocation1 [shape = 'u32[144,128]{1,0:T(1,128)}', space=vmem, size = 0x12000, scoped, tag = 'internal scratch']
  #allocation2 [shape = 'f32[16,16]{1,0:T(8,128)}', space=vmem, size = 0x2000, scoped, tag = 'scratch operand']
  %s0 = inlined_call_operand.vmem [shape: bf16[16,256], index: 0, kind: input, shape index: {}]
  %s1 = inlined_call_operand.vmem [shape: bf16[256,16], index: 1, kind: input, shape index: {}]
  %s2 = inlined_call_operand.vmem [shape: f32[1,16], index: 2, kind: input, shape index: {}]
  %s3 = inlined_call_operand.vmem [shape: f32[16,8], index: 3, kind: input, shape index: {}]
  %s4 = inlined_call_operand.vmem [shape: f32[8,384], index: 4, kind: input, shape index: {}]
  %s5 = inlined_call_operand.vmem [shape: f32[1,384], index: 5, kind: input, shape index: {}]
  %s6 = inlined_call_operand.vmem [shape: f32[128,1], index: 6, kind: input, shape index: {}]
  %s7 = inlined_call_operand.vmem [shape: f32[1,4], index: 7, kind: input, shape index: {}]
  %s8 = inlined_call_operand.vmem [shape: f32[1,4], index: 8, kind: input, shape index: {}]
  %s9 = inlined_call_operand.vmem [shape: f32[1,4], index: 9, kind: input, shape index: {}]
  %s10 = inlined_call_operand.hbm [shape: f32[16,384], index: 10, kind: output, shape index: {0}]
  %s11 = inlined_call_operand.hbm [shape: f32[16,24], index: 11, kind: output, shape index: {1}]
  %s12 = inlined_call_operand.vmem [shape: f32[1,128,4], index: 12, kind: output, shape index: {2}]
  %13 = xla_tuple %s10, %s11, %s12
  %s14 = sld [smem:[#allocation0]]
  $region138: #{tpu_custom_call.1} parent=0
    _
  %s16 = ssub.s32 1, %s14
  %s17 = scalar_select 0, %s16, %s14
  $region1: #{tpu_custom_call.1} parent=0
    #allocation3 [shape = 'u8[8192]{0}', space=vmem, size = 0x2000, scoped, tag = 'input window, operand 0']
    #allocation4 [shape = 'u8[24576]{0}', space=vmem, size = 0x6000, scoped, tag = 'output window, operand 0, single buffered']
    #allocation5 [shape = 's32[2]{0}', space=sflag, size = 0x8, scoped, tag = 'scoped memory for tpu_custom_call.1']
    #allocation6 [shape = 'u8[8192]{0}', space=vmem, size = 0x2000, scoped, tag = 'output window, operand 1, single buffered']
    #allocation7 [shape = 's32[1]{0}', space=sflag, size = 0x4, scoped, tag = 'scoped memory for tpu_custom_call.1']
    %18 = vsyncpa [#allocation5], 0
    %19 = vsyncpa [#allocation7], 0
    loop: start=0, step=1, limit=4
    $region2: #{tpu_custom_call.1} parent=1 // loop_pre_header
      _
    $region3: #{tpu_custom_call.1} parent=1 // loop_header
      %s21 = sphi 0, %s25
      %p22 = scmp.ge.s32.totalorder %s21, 4
      %s28 = sphi 0, %s40
      %s29 = sphi 0, %s36
      %s30 = sphi 0, %s28
      %s31 = sphi 0, %s29
      %s32 = sphi 0, %s30
      %s33 = sphi 0, %s31
      %s45 = sphi 0, %s47
      %s48 = sphi 0, %s45
      %s49 = sphi 0, %s48
      %s65 = sphi 0, %s49
      %s71 = sphi 0, %s73
      %s74 = sphi 0, %s71
      %s75 = sphi 0, %s74
      %s91 = sphi 0, %s75
      %s95 = sphi 0, %s95
      %s97 = sphi 0, %s95
      %s98 = sphi 0, %s97
      %s112 = sphi 0, %s98
      %s118 = sphi 0, %s120
      %s121 = sphi 0, %s118
      %s122 = sphi 0, %s121
      %s138 = sphi 0, %s122
      %s142 = sphi 0, %s142
      %s144 = sphi 0, %s142
      %s145 = sphi 0, %s144
      %s159 = sphi 0, %s145
      %s163 = sphi 0, %s163
      %s165 = sphi 0, %s163
      %s166 = sphi 0, %s165
      %s180 = sphi 0, %s166
      %s184 = sphi 0, %s184
      %s186 = sphi 0, %s184
      %s187 = sphi 0, %s186
      %s201 = sphi 0, %s187
      %s205 = sphi 0, %s205
      %s207 = sphi 0, %s205
      %s208 = sphi 0, %s207
      %s222 = sphi 0, %s208
      %s226 = sphi 0, %s226
      %s228 = sphi 0, %s226
      %s229 = sphi 0, %s228
      %s243 = sphi 0, %s229
      %s247 = sphi 0, %s247
      %s249 = sphi 0, %s247
      %s250 = sphi 0, %s249
      %s264 = sphi 0, %s250
      %s270 = sphi 0, %s272
      %s273 = sphi 0, %s270
      %s274 = sphi 0, %s273
      %s290 = sphi 0, %s274
      %s296 = sphi 0, %s298
      %s299 = sphi 0, %s296
      %s300 = sphi 0, %s299
      %s316 = sphi 0, %s300
      %s322 = sphi 0, %s324
      %s325 = sphi 0, %s322
      %s326 = sphi 0, %s325
      %s342 = sphi 0, %s326
    $region4: #{tpu_custom_call.1} parent=1 // loop_header_branch
      %24 = sbr.rel (%p22) target = $region8
    $region5: #{tpu_custom_call.1} parent=1 // loop_body
      %s26 = ssub.s32 %s21, 1
      %s27 = ssub.s32 %s21, 2
      %s34 = sadd.s32 1, %s29
      %p35 = scmp.ge.s32.totalorder %s34, 2
      %s36 = scalar_select %p35, 0, %s34
      %s37 = sadd.s32 1, %s28
      %s38 = scalar_select %p35, %s37, %s28
      %p39 = scmp.ge.s32.totalorder %s38, 1
      %s40 = scalar_select %p39, 0, %s38
      %s41 = ssub.s32 %s28, %s40
      %s42 = ssub.s32 %s29, %s36
      %s43 = sor.u32 %s41, %s42
      %p44 = scmp.eq.s32.totalorder %s43, 0
      %s46 = sadd.s32 %s45, 1
      %s47 = scalar_select %p44, %s45, %s46
      %p50 = pneg %p44
      %p51 = scmp.eq.s32.totalorder %s21, 1
      %p52 = por %p50, %p51
      %p53 = scmp.ne.s32.totalorder %s45, %s48
      %p54 = scmp.eq.s32.totalorder %s21, 0
      %p55 = por %p53, %p54
      %p56 = scmp.ne.s32.totalorder %s45, %s48
      %p57 = scmp.eq.s32.totalorder %s26, 1
      %p58 = por %p56, %p57
      %p59 = scmp.ne.s32.totalorder %s48, %s49
      %p60 = scmp.eq.s32.totalorder %s26, 0
      %p61 = por %p59, %p60
      %p62 = scmp.ne.s32.totalorder %s48, %s49
      %p63 = scmp.eq.s32.totalorder %s27, 1
      %p64 = por %p62, %p63
      %p66 = scmp.ne.s32.totalorder %s49, %s65
      %p67 = scmp.eq.s32.totalorder %s27, 0
      %p68 = por %p66, %p67
      %s69 = ssub.s32 %s29, %s36
      %p70 = scmp.eq.s32.totalorder %s69, 0
      %s72 = sadd.s32 %s71, 1
      %s73 = scalar_select %p70, %s71, %s72
      %p76 = pneg %p70
      %p77 = scmp.eq.s32.totalorder %s21, 1
      %p78 = por %p76, %p77
      %p79 = scmp.ne.s32.totalorder %s71, %s74
      %p80 = scmp.eq.s32.totalorder %s21, 0
      %p81 = por %p79, %p80
      %p82 = scmp.ne.s32.totalorder %s71, %s74
      %p83 = scmp.eq.s32.totalorder %s26, 1
      %p84 = por %p82, %p83
      %p85 = scmp.ne.s32.totalorder %s74, %s75
      %p86 = scmp.eq.s32.totalorder %s26, 0
      %p87 = por %p85, %p86
      %p88 = scmp.ne.s32.totalorder %s74, %s75
      %p89 = scmp.eq.s32.totalorder %s27, 1
      %p90 = por %p88, %p89
      %p92 = scmp.ne.s32.totalorder %s75, %s91
      %p93 = scmp.eq.s32.totalorder %s27, 0
      %p94 = por %p92, %p93
      %s96 = sadd.s32 %s95, 1
      %p99 = scmp.eq.s32.totalorder %s21, 1
      %p100 = scmp.ne.s32.totalorder %s95, %s97
      %p101 = scmp.eq.s32.totalorder %s21, 0
      %p102 = por %p100, %p101
      %p103 = scmp.ne.s32.totalorder %s95, %s97
      %p104 = scmp.eq.s32.totalorder %s26, 1
      %p105 = por %p103, %p104
      %p106 = scmp.ne.s32.totalorder %s97, %s98
      %p107 = scmp.eq.s32.totalorder %s26, 0
      %p108 = por %p106, %p107
      %p109 = scmp.ne.s32.totalorder %s97, %s98
      %p110 = scmp.eq.s32.totalorder %s27, 1
      %p111 = por %p109, %p110
      %p113 = scmp.ne.s32.totalorder %s98, %s112
      %p114 = scmp.eq.s32.totalorder %s27, 0
      %p115 = por %p113, %p114
      %s116 = ssub.s32 %s28, %s40
      %p117 = scmp.eq.s32.totalorder %s116, 0
      %s119 = sadd.s32 %s118, 1
      %s120 = scalar_select %p117, %s118, %s119
      %p123 = pneg %p117
      %p124 = scmp.eq.s32.totalorder %s21, 1
      %p125 = por %p123, %p124
      %p126 = scmp.ne.s32.totalorder %s118, %s121
      %p127 = scmp.eq.s32.totalorder %s21, 0
      %p128 = por %p126, %p127
      %p129 = scmp.ne.s32.totalorder %s118, %s121
      %p130 = scmp.eq.s32.totalorder %s26, 1
      %p131 = por %p129, %p130
      %p132 = scmp.ne.s32.totalorder %s121, %s122
      %p133 = scmp.eq.s32.totalorder %s26, 0
      %p134 = por %p132, %p133
      %p135 = scmp.ne.s32.totalorder %s121, %s122
      %p136 = scmp.eq.s32.totalorder %s27, 1
      %p137 = por %p135, %p136
      %p139 = scmp.ne.s32.totalorder %s122, %s138
      %p140 = scmp.eq.s32.totalorder %s27, 0
      %p141 = por %p139, %p140
      %s143 = sadd.s32 %s142, 1
      %p146 = scmp.eq.s32.totalorder %s21, 1
      %p147 = scmp.ne.s32.totalorder %s142, %s144
      %p148 = scmp.eq.s32.totalorder %s21, 0
      %p149 = por %p147, %p148
      %p150 = scmp.ne.s32.totalorder %s142, %s144
      %p151 = scmp.eq.s32.totalorder %s26, 1
      %p152 = por %p150, %p151
      %p153 = scmp.ne.s32.totalorder %s144, %s145
      %p154 = scmp.eq.s32.totalorder %s26, 0
      %p155 = por %p153, %p154
      %p156 = scmp.ne.s32.totalorder %s144, %s145
      %p157 = scmp.eq.s32.totalorder %s27, 1
      %p158 = por %p156, %p157
      %p160 = scmp.ne.s32.totalorder %s145, %s159
      %p161 = scmp.eq.s32.totalorder %s27, 0
      %p162 = por %p160, %p161
      %s164 = sadd.s32 %s163, 1
      %p167 = scmp.eq.s32.totalorder %s21, 1
      %p168 = scmp.ne.s32.totalorder %s163, %s165
      %p169 = scmp.eq.s32.totalorder %s21, 0
      %p170 = por %p168, %p169
      %p171 = scmp.ne.s32.totalorder %s163, %s165
      %p172 = scmp.eq.s32.totalorder %s26, 1
      %p173 = por %p171, %p172
      %p174 = scmp.ne.s32.totalorder %s165, %s166
      %p175 = scmp.eq.s32.totalorder %s26, 0
      %p176 = por %p174, %p175
      %p177 = scmp.ne.s32.totalorder %s165, %s166
      %p178 = scmp.eq.s32.totalorder %s27, 1
      %p179 = por %p177, %p178
      %p181 = scmp.ne.s32.totalorder %s166, %s180
      %p182 = scmp.eq.s32.totalorder %s27, 0
      %p183 = por %p181, %p182
      %s185 = sadd.s32 %s184, 1
      %p188 = scmp.eq.s32.totalorder %s21, 1
      %p189 = scmp.ne.s32.totalorder %s184, %s186
      %p190 = scmp.eq.s32.totalorder %s21, 0
      %p191 = por %p189, %p190
      %p192 = scmp.ne.s32.totalorder %s184, %s186
      %p193 = scmp.eq.s32.totalorder %s26, 1
      %p194 = por %p192, %p193
      %p195 = scmp.ne.s32.totalorder %s186, %s187
      %p196 = scmp.eq.s32.totalorder %s26, 0
      %p197 = por %p195, %p196
      %p198 = scmp.ne.s32.totalorder %s186, %s187
      %p199 = scmp.eq.s32.totalorder %s27, 1
      %p200 = por %p198, %p199
      %p202 = scmp.ne.s32.totalorder %s187, %s201
      %p203 = scmp.eq.s32.totalorder %s27, 0
      %p204 = por %p202, %p203
      %s206 = sadd.s32 %s205, 1
      %p209 = scmp.eq.s32.totalorder %s21, 1
      %p210 = scmp.ne.s32.totalorder %s205, %s207
      %p211 = scmp.eq.s32.totalorder %s21, 0
      %p212 = por %p210, %p211
      %p213 = scmp.ne.s32.totalorder %s205, %s207
      %p214 = scmp.eq.s32.totalorder %s26, 1
      %p215 = por %p213, %p214
      %p216 = scmp.ne.s32.totalorder %s207, %s208
      %p217 = scmp.eq.s32.totalorder %s26, 0
      %p218 = por %p216, %p217
      %p219 = scmp.ne.s32.totalorder %s207, %s208
      %p220 = scmp.eq.s32.totalorder %s27, 1
      %p221 = por %p219, %p220
      %p223 = scmp.ne.s32.totalorder %s208, %s222
      %p224 = scmp.eq.s32.totalorder %s27, 0
      %p225 = por %p223, %p224
      %s227 = sadd.s32 %s226, 1
      %p230 = scmp.eq.s32.totalorder %s21, 1
      %p231 = scmp.ne.s32.totalorder %s226, %s228
      %p232 = scmp.eq.s32.totalorder %s21, 0
      %p233 = por %p231, %p232
      %p234 = scmp.ne.s32.totalorder %s226, %s228
      %p235 = scmp.eq.s32.totalorder %s26, 1
      %p236 = por %p234, %p235
      %p237 = scmp.ne.s32.totalorder %s228, %s229
      %p238 = scmp.eq.s32.totalorder %s26, 0
      %p239 = por %p237, %p238
      %p240 = scmp.ne.s32.totalorder %s228, %s229
      %p241 = scmp.eq.s32.totalorder %s27, 1
      %p242 = por %p240, %p241
      %p244 = scmp.ne.s32.totalorder %s229, %s243
      %p245 = scmp.eq.s32.totalorder %s27, 0
      %p246 = por %p244, %p245
      %s248 = sadd.s32 %s247, 1
      %p251 = scmp.eq.s32.totalorder %s21, 1
      %p252 = scmp.ne.s32.totalorder %s247, %s249
      %p253 = scmp.eq.s32.totalorder %s21, 0
      %p254 = por %p252, %p253
      %p255 = scmp.ne.s32.totalorder %s247, %s249
      %p256 = scmp.eq.s32.totalorder %s26, 1
      %p257 = por %p255, %p256
      %p258 = scmp.ne.s32.totalorder %s249, %s250
      %p259 = scmp.eq.s32.totalorder %s26, 0
      %p260 = por %p258, %p259
      %p261 = scmp.ne.s32.totalorder %s249, %s250
      %p262 = scmp.eq.s32.totalorder %s27, 1
      %p263 = por %p261, %p262
      %p265 = scmp.ne.s32.totalorder %s250, %s264
      %p266 = scmp.eq.s32.totalorder %s27, 0
      %p267 = por %p265, %p266
      %s268 = ssub.s32 %s28, %s40
      %p269 = scmp.eq.s32.totalorder %s268, 0
      %s271 = sadd.s32 %s270, 1
      %s272 = scalar_select %p269, %s270, %s271
      %p275 = pneg %p269
      %p276 = scmp.eq.s32.totalorder %s21, 1
      %p277 = por %p275, %p276
      %p278 = scmp.ne.s32.totalorder %s270, %s273
      %p279 = scmp.eq.s32.totalorder %s21, 0
      %p280 = por %p278, %p279
      %p281 = scmp.ne.s32.totalorder %s270, %s273
      %p282 = scmp.eq.s32.totalorder %s26, 1
      %p283 = por %p281, %p282
      %p284 = scmp.ne.s32.totalorder %s273, %s274
      %p285 = scmp.eq.s32.totalorder %s26, 0
      %p286 = por %p284, %p285
      %p287 = scmp.ne.s32.totalorder %s273, %s274
      %p288 = scmp.eq.s32.totalorder %s27, 1
      %p289 = por %p287, %p288
      %p291 = scmp.ne.s32.totalorder %s274, %s290
      %p292 = scmp.eq.s32.totalorder %s27, 0
      %p293 = por %p291, %p292
      %s294 = ssub.s32 %s28, %s40
      %p295 = scmp.eq.s32.totalorder %s294, 0
      %s297 = sadd.s32 %s296, 1
      %s298 = scalar_select %p295, %s296, %s297
      %p301 = pneg %p295
      %p302 = scmp.eq.s32.totalorder %s21, 1
      %p303 = por %p301, %p302
      %p304 = scmp.ne.s32.totalorder %s296, %s299
      %p305 = scmp.eq.s32.totalorder %s21, 0
      %p306 = por %p304, %p305
      %p307 = scmp.ne.s32.totalorder %s296, %s299
      %p308 = scmp.eq.s32.totalorder %s26, 1
      %p309 = por %p307, %p308
      %p310 = scmp.ne.s32.totalorder %s299, %s300
      %p311 = scmp.eq.s32.totalorder %s26, 0
      %p312 = por %p310, %p311
      %p313 = scmp.ne.s32.totalorder %s299, %s300
      %p314 = scmp.eq.s32.totalorder %s27, 1
      %p315 = por %p313, %p314
      %p317 = scmp.ne.s32.totalorder %s300, %s316
      %p318 = scmp.eq.s32.totalorder %s27, 0
      %p319 = por %p317, %p318
      %s320 = ssub.s32 %s28, %s40
      %p321 = scmp.eq.s32.totalorder %s320, 0
      %s323 = sadd.s32 %s322, 1
      %s324 = scalar_select %p321, %s322, %s323
      %p327 = pneg %p321
      %p328 = scmp.eq.s32.totalorder %s21, 1
      %p329 = por %p327, %p328
      %p330 = scmp.ne.s32.totalorder %s322, %s325
      %p331 = scmp.eq.s32.totalorder %s21, 0
      %p332 = por %p330, %p331
      %p333 = scmp.ne.s32.totalorder %s322, %s325
      %p334 = scmp.eq.s32.totalorder %s26, 1
      %p335 = por %p333, %p334
      %p336 = scmp.ne.s32.totalorder %s325, %s326
      %p337 = scmp.eq.s32.totalorder %s26, 0
      %p338 = por %p336, %p337
      %p339 = scmp.ne.s32.totalorder %s325, %s326
      %p340 = scmp.eq.s32.totalorder %s27, 1
      %p341 = por %p339, %p340
      %p343 = scmp.ne.s32.totalorder %s326, %s342
      %p344 = scmp.eq.s32.totalorder %s27, 0
      %p345 = por %p343, %p344
      %p346 = scmp.le.s32.totalorder 1, %s21
      %p347 = scmp.lt.s32.totalorder %s21, 3
      %p348 = pnand %p346, %p347
      %p349 = pneg %p348
      // Predicated region
      $region9: #{tpu_custom_call.1} parent=5 // pred_check
        _
      $region10: #{tpu_custom_call.1} parent=5 // pred_check_branch
        %351 = sbr.rel (%p348) target = $region12
      $region11: #{tpu_custom_call.1} parent=5 // pred_region
        %s352 = ssub.s32 %s21, 1
        // Predicated region
        $region13: #{tpu_custom_call.1} parent=11 // pred_check
          %p353 = pneg %p108
        $region14: #{tpu_custom_call.1} parent=11 // pred_check_branch
          %355 = sbr.rel (%p353) target = $region16
        $region15: #{tpu_custom_call.1} parent=11 // pred_region
          _
        $region16: #{tpu_custom_call.1} parent=11 // pred_fallthru
          _
        // Predicated region
        $region17: #{tpu_custom_call.1} parent=11 // pred_check
          %p356 = pneg %p134
        $region18: #{tpu_custom_call.1} parent=11 // pred_check_branch
          %358 = sbr.rel (%p356) target = $region20
        $region19: #{tpu_custom_call.1} parent=11 // pred_region
          %s359 = smul.u32 2, %s30
          %p360 = scmp.lt.s32.totalorder %s359, 1
          %s361 = scalar_select %p360, %s359, 1
          %s362 = smul.addr %s361, 8
          %s363 = scalar_lea.vmem %s3, %s362
          %s364 = smul.u32 2, %s30
        $region20: #{tpu_custom_call.1} parent=11 // pred_fallthru
          _
        // Predicated region
        $region21: #{tpu_custom_call.1} parent=11 // pred_check
          %p365 = pneg %p155
        $region22: #{tpu_custom_call.1} parent=11 // pred_check_branch
          %367 = sbr.rel (%p365) target = $region24
        $region23: #{tpu_custom_call.1} parent=11 // pred_region
          _
        $region24: #{tpu_custom_call.1} parent=11 // pred_fallthru
          _
        // Predicated region
        $region25: #{tpu_custom_call.1} parent=11 // pred_check
          %p368 = pneg %p176
        $region26: #{tpu_custom_call.1} parent=11 // pred_check_branch
          %370 = sbr.rel (%p368) target = $region28
        $region27: #{tpu_custom_call.1} parent=11 // pred_region
          _
        $region28: #{tpu_custom_call.1} parent=11 // pred_fallthru
          _
        // Predicated region
        $region29: #{tpu_custom_call.1} parent=11 // pred_check
          %p371 = pneg %p197
        $region30: #{tpu_custom_call.1} parent=11 // pred_check_branch
          %373 = sbr.rel (%p371) target = $region32
        $region31: #{tpu_custom_call.1} parent=11 // pred_region
          _
        $region32: #{tpu_custom_call.1} parent=11 // pred_fallthru
          _
        // Predicated region
        $region33: #{tpu_custom_call.1} parent=11 // pred_check
          %p374 = pneg %p218
        $region34: #{tpu_custom_call.1} parent=11 // pred_check_branch
          %376 = sbr.rel (%p374) target = $region36
        $region35: #{tpu_custom_call.1} parent=11 // pred_region
          _
        $region36: #{tpu_custom_call.1} parent=11 // pred_fallthru
          _
        // Predicated region
        $region37: #{tpu_custom_call.1} parent=11 // pred_check
          %p377 = pneg %p239
        $region38: #{tpu_custom_call.1} parent=11 // pred_check_branch
          %379 = sbr.rel (%p377) target = $region40
        $region39: #{tpu_custom_call.1} parent=11 // pred_region
          _
        $region40: #{tpu_custom_call.1} parent=11 // pred_fallthru
          _
        // Predicated region
        $region41: #{tpu_custom_call.1} parent=11 // pred_check
          %p380 = pneg %p260
        $region42: #{tpu_custom_call.1} parent=11 // pred_check_branch
          %382 = sbr.rel (%p380) target = $region44
        $region43: #{tpu_custom_call.1} parent=11 // pred_region
          _
        $region44: #{tpu_custom_call.1} parent=11 // pred_fallthru
          _
      $region12: #{tpu_custom_call.1} parent=5 // pred_fallthru
        _
      %p383 = scmp.lt.s32.totalorder %s21, 2
      // Predicated region
      $region45: #{tpu_custom_call.1} parent=5 // pred_check
        %p384 = pneg %p383
      $region46: #{tpu_custom_call.1} parent=5 // pred_check_branch
        %386 = sbr.rel (%p384) target = $region48
      $region47: #{tpu_custom_call.1} parent=5 // pred_region
        // Predicated region
        $region49: #{tpu_custom_call.1} parent=47 // pred_check
          %p387 = pneg %p55
        $region50: #{tpu_custom_call.1} parent=47 // pred_check_branch
          %389 = sbr.rel (%p387) target = $region52
        $region51: #{tpu_custom_call.1} parent=47 // pred_region
          %s390 = sand.u32 %s45, 1
          %s391 = sand.u32 %s45, 1
          %s392 = smul.addr %s391, 8
          %s393 = scalar_lea.vmem [#allocation3], %s392
          %s394 = smul.u32 2, %s28
          %s395 = smul.addr %s394, 2
          %s396 = sadd.s32 %s29, %s395
          %s397 = smul.addr %s396, 4
          %s398 = scalar_lea.vmem %s0, %s397
          // Predicated region
          $region53: #{tpu_custom_call.1} parent=51 // pred_check
            _
          $region54: #{tpu_custom_call.1} parent=51 // pred_check_branch
            %400 = sbr.rel (0) target = $region56
          $region55: #{tpu_custom_call.1} parent=51 // pred_region
            // Predicated region
            $region57: #{tpu_custom_call.1} parent=55 // pred_check
              _
            $region58: #{tpu_custom_call.1} parent=55 // pred_check_branch
              %402 = sbr.rel target = $region60
            $region59: #{tpu_custom_call.1} parent=55 // pred_region
              // Predicated region
              $region72: #{tpu_custom_call.1} parent=59 // pred_check
                _
              $region73: #{tpu_custom_call.1} parent=59 // pred_check_branch
                %419 = sbr.rel (0) target = $region75
              $region74: #{tpu_custom_call.1} parent=59 // pred_region
                loop: start=0, step=1, limit=1
                $region76: #{tpu_custom_call.1} parent=74 // loop_pre_header
                  _
                $region77: #{tpu_custom_call.1} parent=74 // loop_header
                  %s421 = sphi 0, %s425
                  %p422 = scmp.ge.s32.totalorder %s421, 1
                  %s426 = sphi %s398, %s398
                  %s427 = sphi %s393, %s393
                $region78: #{tpu_custom_call.1} parent=74 // loop_header_branch
                  %424 = sbr.rel (%p422) target = $region82
                $region79: #{tpu_custom_call.1} parent=74 // loop_body
                  _
                $region80: #{tpu_custom_call.1} parent=74 // loop_footer
                  %s425 = sadd.s32 1, %s421
                $region81: #{tpu_custom_call.1} parent=74 // loop_footer_branch
                  %420 = sbr.rel target = $region77
                $region82: #{tpu_custom_call.1} parent=74 // loop_exit
                  _
                loop: start=0, step=1, limit=1
                $region83: #{tpu_custom_call.1} parent=74 // loop_pre_header
                  _
                $region84: #{tpu_custom_call.1} parent=74 // loop_header
                  %s430 = sphi 0, %s434
                  %p431 = scmp.ge.s32.totalorder %s430, 1
                  %s435 = sphi %s398, %s398
                  %s436 = sphi %s393, %s393
                $region85: #{tpu_custom_call.1} parent=74 // loop_header_branch
                  %433 = sbr.rel (%p431) target = $region89
                $region86: #{tpu_custom_call.1} parent=74 // loop_body
                  %v437 = vld [vmem:[%s435] sm:$0xf]
                  %438 = vst [vmem:[%s436] sm:$0xf] %v437
                  %v439 = vld [vmem:[%s435 + $0x8] sm:$0xf]
                  %440 = vst [vmem:[%s436 + $0x4] sm:$0xf] %v439
                $region87: #{tpu_custom_call.1} parent=74 // loop_footer
                  %s434 = sadd.s32 1, %s430
                $region88: #{tpu_custom_call.1} parent=74 // loop_footer_branch
                  %429 = sbr.rel target = $region84
                $region89: #{tpu_custom_call.1} parent=74 // loop_exit
                  _
              $region75: #{tpu_custom_call.1} parent=59 // pred_fallthru
                _
            $region60: #{tpu_custom_call.1} parent=55 // pred_fallthru
              _
            // Predicated region
            $region61: #{tpu_custom_call.1} parent=55 // pred_check
              _
            $region62: #{tpu_custom_call.1} parent=55 // pred_check_branch
              %404 = sbr.rel (0) target = $region64
            $region63: #{tpu_custom_call.1} parent=55 // pred_region
              loop: start=0, step=1, limit=1
              $region65: #{tpu_custom_call.1} parent=63 // loop_pre_header
                _
              $region66: #{tpu_custom_call.1} parent=63 // loop_header
                %s407 = sphi 0, %s411
                %p408 = scmp.ge.s32.totalorder %s407, 1
                %s412 = sphi %s398, %s398
                %s413 = sphi %s393, %s393
              $region67: #{tpu_custom_call.1} parent=63 // loop_header_branch
                %410 = sbr.rel (%p408) target = $region71
              $region68: #{tpu_custom_call.1} parent=63 // loop_body
                %v414 = vld [vmem:[%s412] sm:$0xf]
                %415 = vst [vmem:[%s413] sm:$0xf] %v414
                %v416 = vld [vmem:[%s412 + $0x8] sm:$0xf]
                %417 = vst [vmem:[%s413 + $0x4] sm:$0xf] %v416
              $region69: #{tpu_custom_call.1} parent=63 // loop_footer
                %s411 = sadd.s32 1, %s407
              $region70: #{tpu_custom_call.1} parent=63 // loop_footer_branch
                %406 = sbr.rel target = $region66
              $region71: #{tpu_custom_call.1} parent=63 // loop_exit
                _
            $region64: #{tpu_custom_call.1} parent=55 // pred_fallthru
              _
          $region56: #{tpu_custom_call.1} parent=51 // pred_fallthru
            _
          %441 = vnop
        $region52: #{tpu_custom_call.1} parent=47 // pred_fallthru
          _
        // Predicated region
        $region90: #{tpu_custom_call.1} parent=47 // pred_check
          %p442 = pneg %p81
        $region91: #{tpu_custom_call.1} parent=47 // pred_check_branch
          %444 = sbr.rel (%p442) target = $region93
        $region92: #{tpu_custom_call.1} parent=47 // pred_region
          %s445 = smul.u32 16, %s29
          %p446 = scmp.lt.s32.totalorder %s445, 31
          %s447 = scalar_select %p446, %s445, 31
          %s448 = smul.addr %s447, 4
          %s449 = scalar_lea.vmem %s1, %s448
          %s450 = smul.u32 16, %s29
        $region93: #{tpu_custom_call.1} parent=47 // pred_fallthru
          _
      $region48: #{tpu_custom_call.1} parent=5 // pred_fallthru
        _
      %p451 = scmp.le.s32.totalorder 1, %s21
      %p452 = scmp.lt.s32.totalorder %s21, 3
      %p453 = pnand %p451, %p452
      %p454 = pneg %p453
      // Predicated region
      $region94: #{tpu_custom_call.1} parent=5 // pred_check
        _
      $region95: #{tpu_custom_call.1} parent=5 // pred_check_branch
        %456 = sbr.rel (%p453) target = $region97
      $region96: #{tpu_custom_call.1} parent=5 // pred_region
        %s457 = ssub.s32 %s21, 1
        %s458 = sand.u32 %s48, 1
        %s459 = sand.u32 %s48, 1
        %s460 = smul.addr %s459, 8
        %s461 = scalar_lea.vmem [#allocation3], %s460
        // Predicated region
        $region98: #{tpu_custom_call.1} parent=96 // pred_check
          %p462 = pneg %p61
        $region99: #{tpu_custom_call.1} parent=96 // pred_check_branch
          %464 = sbr.rel (%p462) target = $region101
        $region100: #{tpu_custom_call.1} parent=96 // pred_region
          _
        $region101: #{tpu_custom_call.1} parent=96 // pred_fallthru
          _
        %s465 = sand.u32 %s48, 1
        %s466 = sand.u32 %s48, 1
        %s467 = smul.addr %s466, 8
        %s468 = scalar_lea.vmem [#allocation3], %s467
        %p469 = pneg %p61
        %p470 = pneg %p58
        %s471 = smul.u32 16, %s31
        %p472 = scmp.lt.s32.totalorder %s471, 31
        %s473 = scalar_select %p472, %s471, 31
        %s474 = smul.addr %s473, 4
        %s475 = scalar_lea.vmem %s1, %s474
        %p476 = pneg %p87
        %p477 = pneg %p84
        %p478 = pneg %p108
        %p479 = pneg %p105
        %s480 = smul.u32 2, %s30
        %p481 = scmp.lt.s32.totalorder %s480, 1
        %s482 = scalar_select %p481, %s480, 1
        %s483 = smul.addr %s482, 8
        %s484 = scalar_lea.vmem %s3, %s483
        %p485 = pneg %p134
        %p486 = pneg %p131
        %p487 = pneg %p155
        %p488 = pneg %p152
        %p489 = pneg %p176
        %p490 = pneg %p173
        %p491 = pneg %p197
        %p492 = pneg %p194
        %p493 = pneg %p218
        %p494 = pneg %p215
        %p495 = pneg %p239
        %p496 = pneg %p236
        %p497 = pneg %p260
        %p498 = pneg %p257
        %p499 = pneg %p286
        %p500 = pneg %p283
        %p501 = pneg %p312
        %p502 = pneg %p309
        %p503 = pneg %p338
        %p504 = pneg %p335
        %p505 = scmp.lt.s32.totalorder %s30, 0
        %s506 = scalar_select %p505, %s30, 0
        %s507 = smul.addr %s506, 16
        %s508 = smul.addr %s507, 8
        %s509 = scalar_lea.vmem %s12, %s508
        %s510 = smul.u32 2, %s30
        %s511 = smul.u32 16, %s31
        %p512 = scmp.lt.s32.totalorder %s511, 31
        %s513 = scalar_select %p512, %s511, 31
        %s514 = smul.addr %s513, 4
        %s515 = scalar_lea.vmem %s1, %s514
        %s516 = smul.u32 16, %s31
        %s517 = smul.u32 2, %s30
        %p518 = scmp.lt.s32.totalorder %s517, 1
        %s519 = scalar_select %p518, %s517, 1
        %s520 = smul.addr %s519, 8
        %s521 = scalar_lea.vmem %s3, %s520
        %s522 = smul.u32 2, %s30
        %s523 = smul.u32 2, %s30
        %s524 = smul.u32 2, %s30
        %p525 = scmp.lt.s32.totalorder %s30, 0
        %s526 = scalar_select %p525, %s30, 0
        %s527 = smul.addr %s526, 16
        %s528 = smul.addr %s527, 8
        %s529 = scalar_lea.vmem %s12, %s528
        %p531 = scmp.eq.s32.totalorder %s31, 0
        // Predicated region
        $region102: #{tpu_custom_call.1} parent=96 // pred_check
          %p532 = pneg %p531
        $region103: #{tpu_custom_call.1} parent=96 // pred_check_branch
          %534 = sbr.rel (%p532) target = $region105
        $region104: #{tpu_custom_call.1} parent=96 // pred_region
          %vm535 = vcmask 130048
          %536 = vst.msk [vmem:[#allocation2] sm:$0xff] %vm535, 0.0
          %537 = vst.msk [vmem:[#allocation2 + $0x8] sm:$0xff] %vm535, 0.0
        $region105: #{tpu_custom_call.1} parent=96 // pred_fallthru
          _
        %v538 = vld [vmem:[#allocation2] sm:$0xff]
        %v539 = vld [vmem:[#allocation2 + $0x8] sm:$0xff]
        %v540 = vld [vmem:[%s461] sm:$0xf]
        %v541 = vld [vmem:[%s461 + $0x4] sm:$0xf]
        %v542 = vld [vmem:[%s515] sm:$0xf]
        %v543 = vld [vmem:[%s515 + $0x4] sm:$0xf]
        %v544 = vld [vmem:[%s515 + $0x8] sm:$0xf]
        %v545 = vld [vmem:[%s515 + $0xc] sm:$0xf]
        %v546 = vld [vmem:[%s515 + $0x10] sm:$0xf]
        %v547 = vld [vmem:[%s515 + $0x14] sm:$0xf]
        %v548 = vld [vmem:[%s515 + $0x18] sm:$0xf]
        %v549 = vld [vmem:[%s515 + $0x1c] sm:$0xf]
        %v550 = vld [vmem:[%s515 + $0x20] sm:$0xf]
        %v551 = vld [vmem:[%s515 + $0x24] sm:$0xf]
        %v552 = vld [vmem:[%s515 + $0x28] sm:$0xf]
        %v553 = vld [vmem:[%s515 + $0x2c] sm:$0xf]
        %v554 = vld [vmem:[%s515 + $0x30] sm:$0xf]
        %v555 = vld [vmem:[%s515 + $0x34] sm:$0xf]
        %v556 = vld [vmem:[%s515 + $0x38] sm:$0xf]
        %v557 = vld [vmem:[%s515 + $0x3c] sm:$0xf]
        %v560 = vunpack.c.l.b16 %v540
        %v561 = vunpack.c.l.b16 %v541
        %v562 = vpack.c.b16 %v561, %v560
        %v580 = vunpack.c.l.b16 %v542
        %v581 = vunpack.c.l.b16 %v543
        %v582 = vunpack.c.l.b16 %v544
        %v583 = vunpack.c.l.b16 %v545
        %v584 = vunpack.c.l.b16 %v546
        %v585 = vunpack.c.l.b16 %v547
        %v586 = vunpack.c.l.b16 %v548
        %v587 = vunpack.c.l.b16 %v549
        %v588 = vunpack.c.l.b16 %v550
        %v589 = vunpack.c.l.b16 %v551
        %v590 = vunpack.c.l.b16 %v552
        %v591 = vunpack.c.l.b16 %v553
        %v592 = vunpack.c.l.b16 %v554
        %v593 = vunpack.c.l.b16 %v555
        %v594 = vunpack.c.l.b16 %v556
        %v595 = vunpack.c.l.b16 %v557
        %v596 = vpack.c.b16 %v581, %v580
        %v597 = vpack.c.b16 %v583, %v582
        %v598 = vpack.c.b16 %v585, %v584
        %v599 = vpack.c.b16 %v587, %v586
        %v600 = vpack.c.b16 %v589, %v588
        %v601 = vpack.c.b16 %v591, %v590
        %v602 = vpack.c.b16 %v593, %v592
        %v603 = vpack.c.b16 %v595, %v594
        %612 = vmatprep.subr.bf16.mxu0 0
        %613 = vmatpush1.bf16.msra.mxu0 %v596
        %614 = vmatprep.subr.bf16.mxu0 0
        %615 = vmatpush1.bf16.msra.mxu0 %v597
        %616 = vmatprep.subr.bf16.mxu0 0
        %617 = vmatpush1.bf16.msra.mxu0 %v598
        %618 = vmatprep.subr.bf16.mxu0 0
        %619 = vmatpush1.bf16.msra.mxu0 %v599
        %620 = vmatprep.subr.bf16.mxu0 0
        %621 = vmatpush1.bf16.msra.mxu0 %v600
        %622 = vmatprep.subr.bf16.mxu0 0
        %623 = vmatpush1.bf16.msra.mxu0 %v601
        %624 = vmatprep.subr.bf16.mxu0 0
        %625 = vmatpush1.bf16.msra.mxu0 %v602
        %626 = vmatprep.subr.bf16.mxu0 0
        %627 = vmatpush1.bf16.msra.mxu0 %v603
        %628 = vmatprep.subr.bf16.mxu0 0
        %629 = vmatpush1.bf16.msra.mxu0 0
        %630 = vmatprep.subr.bf16.mxu0 0
        %631 = vmatpush1.bf16.msra.mxu0 0
        %632 = vmatprep.subr.bf16.mxu0 0
        %633 = vmatpush1.bf16.msra.mxu0 0
        %634 = vmatprep.subr.bf16.mxu0 0
        %635 = vmatpush1.bf16.msra.mxu0 0
        %636 = vmatprep.subr.bf16.mxu0 0
        %637 = vmatpush1.bf16.msra.mxu0 0
        %638 = vmatprep.subr.bf16.mxu0 0
        %639 = vmatpush1.bf16.msra.mxu0 0
        %640 = vmatprep.subr.bf16.mxu0 0
        %641 = vmatpush1.bf16.msra.mxu0 0
        %642 = vmatprep.subr.bf16.mxu0 0
        %643 = vmatpush1.bf16.msra.mxu0 0
        %644 = vmatprep.mubr.bf16.mxu0 0
        %645 = vmatmul.mubr.bf16.gmra.mrb[0].mxu0 %v562
        %v646 = vpop.f32.mrb[0].mxu0
        %v647 = vadd.f32 0.0, %v646
        %v648 = vpop.f32.mrb[0].mxu0
        %v649 = vpop.f32.mrb[0].mxu0
        %v650 = vadd.f32 0.0, %v649
        %v651 = vpop.f32.mrb[0].mxu0
        %652 = vdwg.mxu0
        %v653 = vadd.f32 %v538, %v647
        %v654 = vadd.f32 %v539, %v650
        %vm655 = vcmask 130048
        %656 = vst.msk [vmem:[#allocation2] sm:$0xff] %vm655, %v653
        %657 = vst.msk [vmem:[#allocation2 + $0x8] sm:$0xff] %vm655, %v654
        %p658 = scmp.eq.s32.totalorder %s31, 1
        // Predicated region
        $region106: #{tpu_custom_call.1} parent=96 // pred_check
          %p659 = pneg %p658
        $region107: #{tpu_custom_call.1} parent=96 // pred_check_branch
          %661 = sbr.rel (%p659) target = $region109
        $region108: #{tpu_custom_call.1} parent=96 // pred_region
          %v662 = vld [vmem:[#allocation2] sm:$0xff]
          %v663 = vld [vmem:[#allocation2 + $0x8] sm:$0xff]
          %v664 = vld [vmem:[%s2] sm:$0x1]
          %v666 = vlaneseq
          %v667 = vshrl.u32 %v666, 7
          %v668 = vsub.s32 0, %v667
          %v669 = vrot.slane %v664, %v668
          %v671 = vadd.f32 %v662, %v669
          %v672 = vadd.f32 %v663, %v669
          %v673 = vld [vmem:[%s521] sm:$0xff]
          %v674 = vld [vmem:[%s521 + $0x8] sm:$0xff]
          %677 = vrot.lane.b32.xlu0 %v673, 8
          %v678 = vpop.permute.xlu0 %677
          %679 = vrot.lane.b32.xlu0 %v674, 8
          %v680 = vpop.permute.xlu0 %679
          %v683 = vmul.f32 %v671, %v678
          %v684 = vmul.f32 %v672, %v680
          %687 = vrot.lane.b32.xlu0 %v671, 8
          %v688 = vpop.permute.xlu0 %687
          %689 = vrot.lane.b32.xlu0 %v672, 8
          %v690 = vpop.permute.xlu0 %689
          %v693 = vadd.f32 %v683, %v688
          %v694 = vadd.f32 %v684, %v690
          %vm695 = vcmask 64512
          %696 = vst.msk [vmem:[#allocation6] sm:$0xff] %vm695, %v671
          %697 = vst.msk [vmem:[#allocation6 + $0x8] sm:$0xff] %vm695, %v672
          %vm698 = vcmask 130112
          %699 = vst.msk [vmem:[#allocation6] sm:$0xff] %vm698, %v671
          %700 = vst.msk [vmem:[#allocation6 + $0x8] sm:$0xff] %vm698, %v672
          %703 = vrot.lane.b32.xlu0 %v693, 8
          %v704 = vpop.permute.xlu0 %703
          %705 = vrot.lane.b32.xlu0 %v694, 8
          %v706 = vpop.permute.xlu0 %705
          %vm709 = vcmask 195712
          %710 = vst.msk [vmem:[#allocation6] sm:$0xff] %vm709, %v704
          %711 = vst.msk [vmem:[#allocation6 + $0x8] sm:$0xff] %vm709, %v706
          %v712 = vld [vmem:[%s4] sm:$0xff]
          %v713 = vld [vmem:[%s4 + $0x8] sm:$0xff]
          %v714 = vld [vmem:[%s4 + $0x10] sm:$0xff]
          %v715 = vld [vmem:[%s5] sm:$0x7]
          %v717 = vlaneseq
          %v718 = vshrl.u32 %v717, 7
          %v719 = vsub.s32 0, %v718
          %v720 = vrot.slane %v715, %v719
          %v721 = vlaneseq
          %v722 = vshrl.u32 %v721, 7
          %v723 = vsub.s32 1, %v722
          %v724 = vrot.slane %v715, %v723
          %v725 = vlaneseq
          %v726 = vshrl.u32 %v725, 7
          %v727 = vsub.s32 2, %v726
          %v728 = vrot.slane %v715, %v727
          %732 = vrot.lane.b32.xlu0 %v693, 120
          %v733 = vpop.permute.xlu0 %732
          %734 = vrot.lane.b32.xlu0 %v694, 120
          %v735 = vpop.permute.xlu0 %734
          %v736 = vsel %vm695, %v733, 0
          %v738 = vsel %vm695, %v735, 0
          %740 = vmatprep.subr.mxu0 %v713
          %741 = vmatpush1.msra.mxu0 %v712
          %742 = vmatprep.subr.mxu0 0.0
          %743 = vmatpush1.msra.mxu0 0.0
          %744 = vmatprep.subr.mxu0 0.0
          %745 = vmatpush1.msra.mxu0 0.0
          %746 = vmatprep.subr.mxu0 0.0
          %747 = vmatpush1.msra.mxu0 0.0
          %748 = vmatprep.subr.mxu0 0.0
          %749 = vmatpush1.msra.mxu0 0.0
          %750 = vmatprep.subr.mxu0 0.0
          %751 = vmatpush1.msra.mxu0 0.0
          %752 = vmatprep.subr.mxu0 0.0
          %753 = vmatpush1.msra.mxu0 0.0
          %754 = vmatprep.subr.mxu0 0.0
          %755 = vmatpush1.msra.mxu0 0.0
          %756 = vmatprep.subr.mxu0 0.0
          %757 = vmatpush1.msra.mxu0 0.0
          %758 = vmatprep.subr.mxu0 0.0
          %759 = vmatpush1.msra.mxu0 0.0
          %760 = vmatprep.subr.mxu0 0.0
          %761 = vmatpush1.msra.mxu0 0.0
          %762 = vmatprep.subr.mxu0 0.0
          %763 = vmatpush1.msra.mxu0 0.0
          %764 = vmatprep.subr.mxu0 0.0
          %765 = vmatpush1.msra.mxu0 0.0
          %766 = vmatprep.subr.mxu0 0.0
          %767 = vmatpush1.msra.mxu0 0.0
          %768 = vmatprep.subr.mxu0 0.0
          %769 = vmatpush1.msra.mxu0 0.0
          %770 = vmatprep.subr.mxu0 0.0
          %771 = vmatpush1.msra.mxu0 0.0
          %772 = vmatprep.subr.mxu0 0.0
          %773 = vmatpush1.msra.mxu0 0.0
          %774 = vmatprep.subr.mxu0 0.0
          %775 = vmatpush1.msra.mxu0 0.0
          %776 = vmatprep.subr.mxu0 0.0
          %777 = vmatpush1.msra.mxu0 0.0
          %778 = vmatprep.subr.mxu0 0.0
          %779 = vmatpush1.msra.mxu0 0.0
          %780 = vmatprep.subr.mxu0 0.0
          %781 = vmatpush1.msra.mxu0 0.0
          %782 = vmatprep.subr.mxu0 0.0
          %783 = vmatpush1.msra.mxu0 0.0
          %784 = vmatprep.subr.mxu0 0.0
          %785 = vmatpush1.msra.mxu0 0.0
          %786 = vmatprep.subr.mxu0 0.0
          %787 = vmatpush1.msra.mxu0 0.0
          %788 = vmatprep.subr.mxu0 0.0
          %789 = vmatpush1.msra.mxu0 0.0
          %790 = vmatprep.subr.mxu0 0.0
          %791 = vmatpush1.msra.mxu0 0.0
          %792 = vmatprep.subr.mxu0 0.0
          %793 = vmatpush1.msra.mxu0 0.0
          %794 = vmatprep.subr.mxu0 0.0
          %795 = vmatpush1.msra.mxu0 0.0
          %796 = vmatprep.subr.mxu0 0.0
          %797 = vmatpush1.msra.mxu0 0.0
          %798 = vmatprep.subr.mxu0 0.0
          %799 = vmatpush1.msra.mxu0 0.0
          %800 = vmatprep.subr.mxu0 0.0
          %801 = vmatpush1.msra.mxu0 0.0
          %802 = vmatprep.subr.mxu0 0.0
          %803 = vmatpush1.msra.mxu0 0.0
          %804 = vmatprep.mubr.f32.mxu0 0.0
          %805 = vmatmul.mubr.f32.gmra.mrb[0].mxu0 %v736
          %v806 = vpop.f32.mrb[0].mxu0
          %v807 = vadd.f32 %v720, %v806
          %v808 = vpop.f32.mrb[0].mxu0
          %v809 = vadd.f32 %v724, %v808
          %810 = vmatprep.mubr.f32.mxu0 0.0
          %811 = vmatmul.mubr.f32.gmra.mrb[0].mxu0 %v738
          %v812 = vpop.f32.mrb[0].mxu0
          %v813 = vadd.f32 %v720, %v812
          %v814 = vpop.f32.mrb[0].mxu0
          %v815 = vadd.f32 %v724, %v814
          %816 = vdwg.mxu0
          %817 = vmatprep.subr.mxu0 0.0
          %818 = vmatpush1.msra.mxu0 %v714
          %819 = vmatprep.subr.mxu0 0.0
          %820 = vmatpush1.msra.mxu0 0.0
          %821 = vmatprep.subr.mxu0 0.0
          %822 = vmatpush1.msra.mxu0 0.0
          %823 = vmatprep.subr.mxu0 0.0
          %824 = vmatpush1.msra.mxu0 0.0
          %825 = vmatprep.subr.mxu0 0.0
          %826 = vmatpush1.msra.mxu0 0.0
          %827 = vmatprep.subr.mxu0 0.0
          %828 = vmatpush1.msra.mxu0 0.0
          %829 = vmatprep.subr.mxu0 0.0
          %830 = vmatpush1.msra.mxu0 0.0
          %831 = vmatprep.subr.mxu0 0.0
          %832 = vmatpush1.msra.mxu0 0.0
          %833 = vmatprep.subr.mxu0 0.0
          %834 = vmatpush1.msra.mxu0 0.0
          %835 = vmatprep.subr.mxu0 0.0
          %836 = vmatpush1.msra.mxu0 0.0
          %837 = vmatprep.subr.mxu0 0.0
          %838 = vmatpush1.msra.mxu0 0.0
          %839 = vmatprep.subr.mxu0 0.0
          %840 = vmatpush1.msra.mxu0 0.0
          %841 = vmatprep.subr.mxu0 0.0
          %842 = vmatpush1.msra.mxu0 0.0
          %843 = vmatprep.subr.mxu0 0.0
          %844 = vmatpush1.msra.mxu0 0.0
          %845 = vmatprep.subr.mxu0 0.0
          %846 = vmatpush1.msra.mxu0 0.0
          %847 = vmatprep.subr.mxu0 0.0
          %848 = vmatpush1.msra.mxu0 0.0
          %849 = vmatprep.subr.mxu0 0.0
          %850 = vmatpush1.msra.mxu0 0.0
          %851 = vmatprep.subr.mxu0 0.0
          %852 = vmatpush1.msra.mxu0 0.0
          %853 = vmatprep.subr.mxu0 0.0
          %854 = vmatpush1.msra.mxu0 0.0
          %855 = vmatprep.subr.mxu0 0.0
          %856 = vmatpush1.msra.mxu0 0.0
          %857 = vmatprep.subr.mxu0 0.0
          %858 = vmatpush1.msra.mxu0 0.0
          %859 = vmatprep.subr.mxu0 0.0
          %860 = vmatpush1.msra.mxu0 0.0
          %861 = vmatprep.subr.mxu0 0.0
          %862 = vmatpush1.msra.mxu0 0.0
          %863 = vmatprep.subr.mxu0 0.0
          %864 = vmatpush1.msra.mxu0 0.0
          %865 = vmatprep.subr.mxu0 0.0
          %866 = vmatpush1.msra.mxu0 0.0
          %867 = vmatprep.subr.mxu0 0.0
          %868 = vmatpush1.msra.mxu0 0.0
          %869 = vmatprep.subr.mxu0 0.0
          %870 = vmatpush1.msra.mxu0 0.0
          %871 = vmatprep.subr.mxu0 0.0
          %872 = vmatpush1.msra.mxu0 0.0
          %873 = vmatprep.subr.mxu0 0.0
          %874 = vmatpush1.msra.mxu0 0.0
          %875 = vmatprep.subr.mxu0 0.0
          %876 = vmatpush1.msra.mxu0 0.0
          %877 = vmatprep.subr.mxu0 0.0
          %878 = vmatpush1.msra.mxu0 0.0
          %879 = vmatprep.subr.mxu0 0.0
          %880 = vmatpush1.msra.mxu0 0.0
          %881 = vmatprep.mubr.f32.mxu0 0.0
          %882 = vmatmul.mubr.f32.gmra.mrb[0].mxu0 %v736
          %v883 = vpop.f32.mrb[0].mxu0
          %v884 = vadd.f32 %v728, %v883
          %v885 = vpop.f32.mrb[0].mxu0
          %886 = vmatprep.mubr.f32.mxu0 0.0
          %887 = vmatmul.mubr.f32.gmra.mrb[0].mxu0 %v738
          %v888 = vpop.f32.mrb[0].mxu0
          %v889 = vadd.f32 %v728, %v888
          %v890 = vpop.f32.mrb[0].mxu0
          %891 = vdwg.mxu0
          %892 = vst [vmem:[#allocation4] sm:$0xff] %v807
          %893 = vst [vmem:[#allocation4 + $0x8] sm:$0xff] %v809
          %894 = vst [vmem:[#allocation4 + $0x10] sm:$0xff] %v884
          %895 = vst [vmem:[#allocation4 + $0x18] sm:$0xff] %v813
          %896 = vst [vmem:[#allocation4 + $0x20] sm:$0xff] %v815
          %897 = vst [vmem:[#allocation4 + $0x28] sm:$0xff] %v889
          %v898 = vld [vmem:[%s7] sm:$0x1]
          %vm899 = vcmask 24576
          %v900 = vsel %vm899, %v898, -inf
          %901 = vmax.xlane.f32.xlu0 %v900
          %v902 = vpop.xlane.xlu0 %901
          %v903 = vsub.f32 %v898, %v902
          %v904 = vmul.f32 %v903, 1.442695
          %v905 = vpow.pop %v904
          %v906 = vsel %vm899, %v905, 0.0
          %907 = vadd.xlane.f32.xlu0 %v906
          %v908 = vpop.xlane.xlu0 %907
          %v909 = vlog2.pop %v908
          %v910 = vmul.f32 %v909, 0.6931472
          %v911 = vsub.f32 %v903, %v910
          %v912 = vld [vmem:[%s9] sm:$0x1]
          %v913 = vmul.f32 %v912, %v912
          %v914 = vrcp.pop %v913
          %v915 = vld [vmem:[%s6] sm:$0xff]
          %v916 = vld [vmem:[%s6 + $0x8] sm:$0xff]
          %v917 = vld [vmem:[%s6 + $0x10] sm:$0xff]
          %v918 = vld [vmem:[%s6 + $0x18] sm:$0xff]
          %v919 = vld [vmem:[%s6 + $0x20] sm:$0xff]
          %v920 = vld [vmem:[%s6 + $0x28] sm:$0xff]
          %v921 = vld [vmem:[%s6 + $0x30] sm:$0xff]
          %v922 = vld [vmem:[%s6 + $0x38] sm:$0xff]
          %v923 = vld [vmem:[%s6 + $0x40] sm:$0xff]
          %v924 = vld [vmem:[%s6 + $0x48] sm:$0xff]
          %v925 = vld [vmem:[%s6 + $0x50] sm:$0xff]
          %v926 = vld [vmem:[%s6 + $0x58] sm:$0xff]
          %v927 = vld [vmem:[%s6 + $0x60] sm:$0xff]
          %v928 = vld [vmem:[%s6 + $0x68] sm:$0xff]
          %v929 = vld [vmem:[%s6 + $0x70] sm:$0xff]
          %v930 = vld [vmem:[%s6 + $0x78] sm:$0xff]
          %v931 = vld [vmem:[%s8] sm:$0x1]
          %933 = vset.pattern.permute.xlu0 0
          %934 = vperm.xlu0 %933, %v915
          %v935 = vpop.permute.xlu0 %934
          %938 = vset.pattern.permute.xlu0 0
          %939 = vperm.xlu0 %938, %v916
          %v940 = vpop.permute.xlu0 %939
          %943 = vset.pattern.permute.xlu0 0
          %944 = vperm.xlu0 %943, %v917
          %v945 = vpop.permute.xlu0 %944
          %948 = vset.pattern.permute.xlu0 0
          %949 = vperm.xlu0 %948, %v918
          %v950 = vpop.permute.xlu0 %949
          %953 = vset.pattern.permute.xlu0 0
          %954 = vperm.xlu0 %953, %v919
          %v955 = vpop.permute.xlu0 %954
          %958 = vset.pattern.permute.xlu0 0
          %959 = vperm.xlu0 %958, %v920
          %v960 = vpop.permute.xlu0 %959
          %963 = vset.pattern.permute.xlu0 0
          %964 = vperm.xlu0 %963, %v921
          %v965 = vpop.permute.xlu0 %964
          %968 = vset.pattern.permute.xlu0 0
          %969 = vperm.xlu0 %968, %v922
          %v970 = vpop.permute.xlu0 %969
          %973 = vset.pattern.permute.xlu0 0
          %974 = vperm.xlu0 %973, %v923
          %v975 = vpop.permute.xlu0 %974
          %978 = vset.pattern.permute.xlu0 0
          %979 = vperm.xlu0 %978, %v924
          %v980 = vpop.permute.xlu0 %979
          %983 = vset.pattern.permute.xlu0 0
          %984 = vperm.xlu0 %983, %v925
          %v985 = vpop.permute.xlu0 %984
          %988 = vset.pattern.permute.xlu0 0
          %989 = vperm.xlu0 %988, %v926
          %v990 = vpop.permute.xlu0 %989
          %993 = vset.pattern.permute.xlu0 0
          %994 = vperm.xlu0 %993, %v927
          %v995 = vpop.permute.xlu0 %994
          %998 = vset.pattern.permute.xlu0 0
          %999 = vperm.xlu0 %998, %v928
          %v1000 = vpop.permute.xlu0 %999
          %1003 = vset.pattern.permute.xlu0 0
          %1004 = vperm.xlu0 %1003, %v929
          %v1005 = vpop.permute.xlu0 %1004
          %1008 = vset.pattern.permute.xlu0 0
          %1009 = vperm.xlu0 %1008, %v930
          %v1010 = vpop.permute.xlu0 %1009
          %v1013 = vlaneseq
          %v1014 = vshrl.u32 %v1013, 7
          %v1015 = vsub.s32 0, %v1014
          %v1016 = vrot.slane %v931, %v1015
          %v1018 = vsub.f32 %v935, %v1016
          %v1019 = vsub.f32 %v940, %v1016
          %v1020 = vsub.f32 %v945, %v1016
          %v1021 = vsub.f32 %v950, %v1016
          %v1022 = vsub.f32 %v955, %v1016
          %v1023 = vsub.f32 %v960, %v1016
          %v1024 = vsub.f32 %v965, %v1016
          %v1025 = vsub.f32 %v970, %v1016
          %v1026 = vsub.f32 %v975, %v1016
          %v1027 = vsub.f32 %v980, %v1016
          %v1028 = vsub.f32 %v985, %v1016
          %v1029 = vsub.f32 %v990, %v1016
          %v1030 = vsub.f32 %v995, %v1016
          %v1031 = vsub.f32 %v1000, %v1016
          %v1032 = vsub.f32 %v1005, %v1016
          %v1033 = vsub.f32 %v1010, %v1016
          %v1034 = vmul.f32 %v1018, -0.5
          %v1035 = vmul.f32 %v1019, -0.5
          %v1036 = vmul.f32 %v1020, -0.5
          %v1037 = vmul.f32 %v1021, -0.5
          %v1038 = vmul.f32 %v1022, -0.5
          %v1039 = vmul.f32 %v1023, -0.5
          %v1040 = vmul.f32 %v1024, -0.5
          %v1041 = vmul.f32 %v1025, -0.5
          %v1042 = vmul.f32 %v1026, -0.5
          %v1043 = vmul.f32 %v1027, -0.5
          %v1044 = vmul.f32 %v1028, -0.5
          %v1045 = vmul.f32 %v1029, -0.5
          %v1046 = vmul.f32 %v1030, -0.5
          %v1047 = vmul.f32 %v1031, -0.5
          %v1048 = vmul.f32 %v1032, -0.5
          %v1049 = vmul.f32 %v1033, -0.5
          %v1050 = vmul.f32 %v1034, %v1018
          %v1051 = vmul.f32 %v1035, %v1019
          %v1052 = vmul.f32 %v1036, %v1020
          %v1053 = vmul.f32 %v1037, %v1021
          %v1054 = vmul.f32 %v1038, %v1022
          %v1055 = vmul.f32 %v1039, %v1023
          %v1056 = vmul.f32 %v1040, %v1024
          %v1057 = vmul.f32 %v1041, %v1025
          %v1058 = vmul.f32 %v1042, %v1026
          %v1059 = vmul.f32 %v1043, %v1027
          %v1060 = vmul.f32 %v1044, %v1028
          %v1061 = vmul.f32 %v1045, %v1029
          %v1062 = vmul.f32 %v1046, %v1030
          %v1063 = vmul.f32 %v1047, %v1031
          %v1064 = vmul.f32 %v1048, %v1032
          %v1065 = vmul.f32 %v1049, %v1033
          %v1067 = vlaneseq
          %v1068 = vshrl.u32 %v1067, 7
          %v1069 = vsub.s32 0, %v1068
          %v1070 = vrot.slane %v914, %v1069
          %v1072 = vmul.f32 %v1050, %v1070
          %v1073 = vmul.f32 %v1051, %v1070
          %v1074 = vmul.f32 %v1052, %v1070
          %v1075 = vmul.f32 %v1053, %v1070
          %v1076 = vmul.f32 %v1054, %v1070
          %v1077 = vmul.f32 %v1055, %v1070
          %v1078 = vmul.f32 %v1056, %v1070
          %v1079 = vmul.f32 %v1057, %v1070
          %v1080 = vmul.f32 %v1058, %v1070
          %v1081 = vmul.f32 %v1059, %v1070
          %v1082 = vmul.f32 %v1060, %v1070
          %v1083 = vmul.f32 %v1061, %v1070
          %v1084 = vmul.f32 %v1062, %v1070
          %v1085 = vmul.f32 %v1063, %v1070
          %v1086 = vmul.f32 %v1064, %v1070
          %v1087 = vmul.f32 %v1065, %v1070
          %v1089 = vlaneseq
          %v1090 = vshrl.u32 %v1089, 7
          %v1091 = vsub.s32 0, %v1090
          %v1092 = vrot.slane %v911, %v1091
          %v1094 = vadd.f32 %v1072, %v1092
          %v1095 = vadd.f32 %v1073, %v1092
          %v1096 = vadd.f32 %v1074, %v1092
          %v1097 = vadd.f32 %v1075, %v1092
          %v1098 = vadd.f32 %v1076, %v1092
          %v1099 = vadd.f32 %v1077, %v1092
          %v1100 = vadd.f32 %v1078, %v1092
          %v1101 = vadd.f32 %v1079, %v1092
          %v1102 = vadd.f32 %v1080, %v1092
          %v1103 = vadd.f32 %v1081, %v1092
          %v1104 = vadd.f32 %v1082, %v1092
          %v1105 = vadd.f32 %v1083, %v1092
          %v1106 = vadd.f32 %v1084, %v1092
          %v1107 = vadd.f32 %v1085, %v1092
          %v1108 = vadd.f32 %v1086, %v1092
          %v1109 = vadd.f32 %v1087, %v1092
          %v1110 = vmul.f32 %v1094, 20.0
          %v1111 = vmul.f32 %v1095, 20.0
          %v1112 = vmul.f32 %v1096, 20.0
          %v1113 = vmul.f32 %v1097, 20.0
          %v1114 = vmul.f32 %v1098, 20.0
          %v1115 = vmul.f32 %v1099, 20.0
          %v1116 = vmul.f32 %v1100, 20.0
          %v1117 = vmul.f32 %v1101, 20.0
          %v1118 = vmul.f32 %v1102, 20.0
          %v1119 = vmul.f32 %v1103, 20.0
          %v1120 = vmul.f32 %v1104, 20.0
          %v1121 = vmul.f32 %v1105, 20.0
          %v1122 = vmul.f32 %v1106, 20.0
          %v1123 = vmul.f32 %v1107, 20.0
          %v1124 = vmul.f32 %v1108, 20.0
          %v1125 = vmul.f32 %v1109, 20.0
          %vm1126 = vcmask 31744
          %v1127 = vsel %vm1126, %v1110, -inf
          %1128 = vmax.xlane.f32.xlu0 %v1127
          %v1129 = vpop.xlane.xlu0 %1128
          %v1130 = vsel %vm1126, %v1111, -inf
          %1131 = vmax.xlane.f32.xlu0 %v1130
          %v1132 = vpop.xlane.xlu0 %1131
          %v1133 = vsel %vm1126, %v1112, -inf
          %1134 = vmax.xlane.f32.xlu0 %v1133
          %v1135 = vpop.xlane.xlu0 %1134
          %v1136 = vsel %vm1126, %v1113, -inf
          %1137 = vmax.xlane.f32.xlu0 %v1136
          %v1138 = vpop.xlane.xlu0 %1137
          %v1139 = vsel %vm1126, %v1114, -inf
          %1140 = vmax.xlane.f32.xlu0 %v1139
          %v1141 = vpop.xlane.xlu0 %1140
          %v1142 = vsel %vm1126, %v1115, -inf
          %1143 = vmax.xlane.f32.xlu0 %v1142
          %v1144 = vpop.xlane.xlu0 %1143
          %v1145 = vsel %vm1126, %v1116, -inf
          %1146 = vmax.xlane.f32.xlu0 %v1145
          %v1147 = vpop.xlane.xlu0 %1146
          %v1148 = vsel %vm1126, %v1117, -inf
          %1149 = vmax.xlane.f32.xlu0 %v1148
          %v1150 = vpop.xlane.xlu0 %1149
          %v1151 = vsel %vm1126, %v1118, -inf
          %1152 = vmax.xlane.f32.xlu0 %v1151
          %v1153 = vpop.xlane.xlu0 %1152
          %v1154 = vsel %vm1126, %v1119, -inf
          %1155 = vmax.xlane.f32.xlu0 %v1154
          %v1156 = vpop.xlane.xlu0 %1155
          %v1157 = vsel %vm1126, %v1120, -inf
          %1158 = vmax.xlane.f32.xlu0 %v1157
          %v1159 = vpop.xlane.xlu0 %1158
          %v1160 = vsel %vm1126, %v1121, -inf
          %1161 = vmax.xlane.f32.xlu0 %v1160
          %v1162 = vpop.xlane.xlu0 %1161
          %v1163 = vsel %vm1126, %v1122, -inf
          %1164 = vmax.xlane.f32.xlu0 %v1163
          %v1165 = vpop.xlane.xlu0 %1164
          %v1166 = vsel %vm1126, %v1123, -inf
          %1167 = vmax.xlane.f32.xlu0 %v1166
          %v1168 = vpop.xlane.xlu0 %1167
          %v1169 = vsel %vm1126, %v1124, -inf
          %1170 = vmax.xlane.f32.xlu0 %v1169
          %v1171 = vpop.xlane.xlu0 %1170
          %v1172 = vsel %vm1126, %v1125, -inf
          %1173 = vmax.xlane.f32.xlu0 %v1172
          %v1174 = vpop.xlane.xlu0 %1173
          %v1175 = vsub.f32 %v1110, %v1129
          %v1176 = vsub.f32 %v1111, %v1132
          %v1177 = vsub.f32 %v1112, %v1135
          %v1178 = vsub.f32 %v1113, %v1138
          %v1179 = vsub.f32 %v1114, %v1141
          %v1180 = vsub.f32 %v1115, %v1144
          %v1181 = vsub.f32 %v1116, %v1147
          %v1182 = vsub.f32 %v1117, %v1150
          %v1183 = vsub.f32 %v1118, %v1153
          %v1184 = vsub.f32 %v1119, %v1156
          %v1185 = vsub.f32 %v1120, %v1159
          %v1186 = vsub.f32 %v1121, %v1162
          %v1187 = vsub.f32 %v1122, %v1165
          %v1188 = vsub.f32 %v1123, %v1168
          %v1189 = vsub.f32 %v1124, %v1171
          %v1190 = vsub.f32 %v1125, %v1174
          %v1191 = vmul.f32 %v1175, 1.442695
          %v1192 = vpow.pop %v1191
          %v1193 = vmul.f32 %v1176, 1.442695
          %v1194 = vpow.pop %v1193
          %v1195 = vmul.f32 %v1177, 1.442695
          %v1196 = vpow.pop %v1195
          %v1197 = vmul.f32 %v1178, 1.442695
          %v1198 = vpow.pop %v1197
          %v1199 = vmul.f32 %v1179, 1.442695
          %v1200 = vpow.pop %v1199
          %v1201 = vmul.f32 %v1180, 1.442695
          %v1202 = vpow.pop %v1201
          %v1203 = vmul.f32 %v1181, 1.442695
          %v1204 = vpow.pop %v1203
          %v1205 = vmul.f32 %v1182, 1.442695
          %v1206 = vpow.pop %v1205
          %v1207 = vmul.f32 %v1183, 1.442695
          %v1208 = vpow.pop %v1207
          %v1209 = vmul.f32 %v1184, 1.442695
          %v1210 = vpow.pop %v1209
          %v1211 = vmul.f32 %v1185, 1.442695
          %v1212 = vpow.pop %v1211
          %v1213 = vmul.f32 %v1186, 1.442695
          %v1214 = vpow.pop %v1213
          %v1215 = vmul.f32 %v1187, 1.442695
          %v1216 = vpow.pop %v1215
          %v1217 = vmul.f32 %v1188, 1.442695
          %v1218 = vpow.pop %v1217
          %v1219 = vmul.f32 %v1189, 1.442695
          %v1220 = vpow.pop %v1219
          %v1221 = vmul.f32 %v1190, 1.442695
          %v1222 = vpow.pop %v1221
          %v1223 = vsel %vm1126, %v1192, 0.0
          %1224 = vadd.xlane.f32.xlu0 %v1223
          %v1225 = vpop.xlane.xlu0 %1224
          %v1226 = vsel %vm1126, %v1194, 0.0
          %1227 = vadd.xlane.f32.xlu0 %v1226
          %v1228 = vpop.xlane.xlu0 %1227
          %v1229 = vsel %vm1126, %v1196, 0.0
          %1230 = vadd.xlane.f32.xlu0 %v1229
          %v1231 = vpop.xlane.xlu0 %1230
          %v1232 = vsel %vm1126, %v1198, 0.0
          %1233 = vadd.xlane.f32.xlu0 %v1232
          %v1234 = vpop.xlane.xlu0 %1233
          %v1235 = vsel %vm1126, %v1200, 0.0
          %1236 = vadd.xlane.f32.xlu0 %v1235
          %v1237 = vpop.xlane.xlu0 %1236
          %v1238 = vsel %vm1126, %v1202, 0.0
          %1239 = vadd.xlane.f32.xlu0 %v1238
          %v1240 = vpop.xlane.xlu0 %1239
          %v1241 = vsel %vm1126, %v1204, 0.0
          %1242 = vadd.xlane.f32.xlu0 %v1241
          %v1243 = vpop.xlane.xlu0 %1242
          %v1244 = vsel %vm1126, %v1206, 0.0
          %1245 = vadd.xlane.f32.xlu0 %v1244
          %v1246 = vpop.xlane.xlu0 %1245
          %v1247 = vsel %vm1126, %v1208, 0.0
          %1248 = vadd.xlane.f32.xlu0 %v1247
          %v1249 = vpop.xlane.xlu0 %1248
          %v1250 = vsel %vm1126, %v1210, 0.0
          %1251 = vadd.xlane.f32.xlu0 %v1250
          %v1252 = vpop.xlane.xlu0 %1251
          %v1253 = vsel %vm1126, %v1212, 0.0
          %1254 = vadd.xlane.f32.xlu0 %v1253
          %v1255 = vpop.xlane.xlu0 %1254
          %v1256 = vsel %vm1126, %v1214, 0.0
          %1257 = vadd.xlane.f32.xlu0 %v1256
          %v1258 = vpop.xlane.xlu0 %1257
          %v1259 = vsel %vm1126, %v1216, 0.0
          %1260 = vadd.xlane.f32.xlu0 %v1259
          %v1261 = vpop.xlane.xlu0 %1260
          %v1262 = vsel %vm1126, %v1218, 0.0
          %1263 = vadd.xlane.f32.xlu0 %v1262
          %v1264 = vpop.xlane.xlu0 %1263
          %v1265 = vsel %vm1126, %v1220, 0.0
          %1266 = vadd.xlane.f32.xlu0 %v1265
          %v1267 = vpop.xlane.xlu0 %1266
          %v1268 = vsel %vm1126, %v1222, 0.0
          %1269 = vadd.xlane.f32.xlu0 %v1268
          %v1270 = vpop.xlane.xlu0 %1269
          %v1271 = vrcp.pop %v1225
          %v1272 = vrcp.pop %v1228
          %v1273 = vrcp.pop %v1231
          %v1274 = vrcp.pop %v1234
          %v1275 = vrcp.pop %v1237
          %v1276 = vrcp.pop %v1240
          %v1277 = vrcp.pop %v1243
          %v1278 = vrcp.pop %v1246
          %v1279 = vrcp.pop %v1249
          %v1280 = vrcp.pop %v1252
          %v1281 = vrcp.pop %v1255
          %v1282 = vrcp.pop %v1258
          %v1283 = vrcp.pop %v1261
          %v1284 = vrcp.pop %v1264
          %v1285 = vrcp.pop %v1267
          %v1286 = vrcp.pop %v1270
          %v1287 = vmul.f32 %v1225, %v1271
          %v1288 = vmul.f32 %v1228, %v1272
          %v1289 = vmul.f32 %v1231, %v1273
          %v1290 = vmul.f32 %v1234, %v1274
          %v1291 = vmul.f32 %v1237, %v1275
          %v1292 = vmul.f32 %v1240, %v1276
          %v1293 = vmul.f32 %v1243, %v1277
          %v1294 = vmul.f32 %v1246, %v1278
          %v1295 = vmul.f32 %v1249, %v1279
          %v1296 = vmul.f32 %v1252, %v1280
          %v1297 = vmul.f32 %v1255, %v1281
          %v1298 = vmul.f32 %v1258, %v1282
          %v1299 = vmul.f32 %v1261, %v1283
          %v1300 = vmul.f32 %v1264, %v1284
          %v1301 = vmul.f32 %v1267, %v1285
          %v1302 = vmul.f32 %v1270, %v1286
          %v1303 = vsub.f32 2.0, %v1287
          %v1304 = vsub.f32 2.0, %v1288
          %v1305 = vsub.f32 2.0, %v1289
          %v1306 = vsub.f32 2.0, %v1290
          %v1307 = vsub.f32 2.0, %v1291
          %v1308 = vsub.f32 2.0, %v1292
          %v1309 = vsub.f32 2.0, %v1293
          %v1310 = vsub.f32 2.0, %v1294
          %v1311 = vsub.f32 2.0, %v1295
          %v1312 = vsub.f32 2.0, %v1296
          %v1313 = vsub.f32 2.0, %v1297
          %v1314 = vsub.f32 2.0, %v1298
          %v1315 = vsub.f32 2.0, %v1299
          %v1316 = vsub.f32 2.0, %v1300
          %v1317 = vsub.f32 2.0, %v1301
          %v1318 = vsub.f32 2.0, %v1302
          %v1319 = vmul.f32 %v1271, %v1303
          %v1320 = vmul.f32 %v1272, %v1304
          %v1321 = vmul.f32 %v1273, %v1305
          %v1322 = vmul.f32 %v1274, %v1306
          %v1323 = vmul.f32 %v1275, %v1307
          %v1324 = vmul.f32 %v1276, %v1308
          %v1325 = vmul.f32 %v1277, %v1309
          %v1326 = vmul.f32 %v1278, %v1310
          %v1327 = vmul.f32 %v1279, %v1311
          %v1328 = vmul.f32 %v1280, %v1312
          %v1329 = vmul.f32 %v1281, %v1313
          %v1330 = vmul.f32 %v1282, %v1314
          %v1331 = vmul.f32 %v1283, %v1315
          %v1332 = vmul.f32 %v1284, %v1316
          %v1333 = vmul.f32 %v1285, %v1317
          %v1334 = vmul.f32 %v1286, %v1318
          %v1335 = vmul.f32 %v1192, %v1319
          %v1336 = vmul.f32 %v1194, %v1320
          %v1337 = vmul.f32 %v1196, %v1321
          %v1338 = vmul.f32 %v1198, %v1322
          %v1339 = vmul.f32 %v1200, %v1323
          %v1340 = vmul.f32 %v1202, %v1324
          %v1341 = vmul.f32 %v1204, %v1325
          %v1342 = vmul.f32 %v1206, %v1326
          %v1343 = vmul.f32 %v1208, %v1327
          %v1344 = vmul.f32 %v1210, %v1328
          %v1345 = vmul.f32 %v1212, %v1329
          %v1346 = vmul.f32 %v1214, %v1330
          %v1347 = vmul.f32 %v1216, %v1331
          %v1348 = vmul.f32 %v1218, %v1332
          %v1349 = vmul.f32 %v1220, %v1333
          %v1350 = vmul.f32 %v1222, %v1334
          %1351 = vst.msk [vmem:[%s529] sm:$0xff] %vm1126, %v1335
          %1352 = vst.msk [vmem:[%s529 + $0x8] sm:$0xff] %vm1126, %v1336
          %1353 = vst.msk [vmem:[%s529 + $0x10] sm:$0xff] %vm1126, %v1337
          %1354 = vst.msk [vmem:[%s529 + $0x18] sm:$0xff] %vm1126, %v1338
          %1355 = vst.msk [vmem:[%s529 + $0x20] sm:$0xff] %vm1126, %v1339
          %1356 = vst.msk [vmem:[%s529 + $0x28] sm:$0xff] %vm1126, %v1340
          %1357 = vst.msk [vmem:[%s529 + $0x30] sm:$0xff] %vm1126, %v1341
          %1358 = vst.msk [vmem:[%s529 + $0x38] sm:$0xff] %vm1126, %v1342
          %1359 = vst.msk [vmem:[%s529 + $0x40] sm:$0xff] %vm1126, %v1343
          %1360 = vst.msk [vmem:[%s529 + $0x48] sm:$0xff] %vm1126, %v1344
          %1361 = vst.msk [vmem:[%s529 + $0x50] sm:$0xff] %vm1126, %v1345
          %1362 = vst.msk [vmem:[%s529 + $0x58] sm:$0xff] %vm1126, %v1346
          %1363 = vst.msk [vmem:[%s529 + $0x60] sm:$0xff] %vm1126, %v1347
          %1364 = vst.msk [vmem:[%s529 + $0x68] sm:$0xff] %vm1126, %v1348
          %1365 = vst.msk [vmem:[%s529 + $0x70] sm:$0xff] %vm1126, %v1349
          %1366 = vst.msk [vmem:[%s529 + $0x78] sm:$0xff] %vm1126, %v1350
        $region109: #{tpu_custom_call.1} parent=96 // pred_fallthru
          _
        %p1367 = scmp.lt.s32.totalorder %s30, 0
        %s1368 = scalar_select %p1367, %s30, 0
        %s1369 = smul.addr %s1368, 16
        %s1370 = smul.addr %s1369, 8
        %s1371 = scalar_lea.vmem %s12, %s1370
        // Predicated region
        $region110: #{tpu_custom_call.1} parent=96 // pred_check
          %p1372 = pneg %p283
        $region111: #{tpu_custom_call.1} parent=96 // pred_check_branch
          %1374 = sbr.rel (%p1372) target = $region113
        $region112: #{tpu_custom_call.1} parent=96 // pred_region
          %s1375 = smul.u32 2, %s30
          %s1377 = ssub.s32 768, 768
          %1378 = vsyncadd [#allocation5], %s1377
          %s1379 = smul.addr %s1375, 3
          %s1380 = smul.addr %s1379, 128
          %s1381 = scalar_lea.hbm %s10, %s1380
          %s1382 = sshll.u32 [#allocation4], 4
          %s1383 = int_to_ptr.vmem [resolvable:$true] %s1382
          %1388 = dma.vmem_to_hbm [thread:$0]  %s1383, 768, %s1381, [#allocation5], 384, 384, 24
        $region113: #{tpu_custom_call.1} parent=96 // pred_fallthru
          _
        // Predicated region
        $region114: #{tpu_custom_call.1} parent=96 // pred_check
          %p1389 = pneg %p309
        $region115: #{tpu_custom_call.1} parent=96 // pred_check_branch
          %1391 = sbr.rel (%p1389) target = $region117
        $region116: #{tpu_custom_call.1} parent=96 // pred_region
          %s1392 = smul.u32 2, %s30
          %s1394 = ssub.s32 256, 256
          %1395 = vsyncadd [#allocation7], %s1394
          %s1396 = smul.addr %s1392, 128
          %s1397 = scalar_lea.hbm %s11, %s1396
          %s1398 = sshll.u32 [#allocation6], 4
          %s1399 = int_to_ptr.vmem [resolvable:$true] %s1398
          %1404 = dma.vmem_to_hbm [thread:$0]  %s1399, 256, %s1397, [#allocation7], 128, 128, 8
        $region117: #{tpu_custom_call.1} parent=96 // pred_fallthru
          _
        // Predicated region
        $region118: #{tpu_custom_call.1} parent=96 // pred_check
          %p1405 = pneg %p335
        $region119: #{tpu_custom_call.1} parent=96 // pred_check_branch
          %1407 = sbr.rel (%p1405) target = $region121
        $region120: #{tpu_custom_call.1} parent=96 // pred_region
          _
        $region121: #{tpu_custom_call.1} parent=96 // pred_fallthru
          _
        // Predicated region
        $region122: #{tpu_custom_call.1} parent=96 // pred_check
          %p1408 = pneg %p283
        $region123: #{tpu_custom_call.1} parent=96 // pred_check_branch
          %1410 = sbr.rel (%p1408) target = $region125
        $region124: #{tpu_custom_call.1} parent=96 // pred_region
          %1411 = dma.done [#allocation5], 768
        $region125: #{tpu_custom_call.1} parent=96 // pred_fallthru
          _
        // Predicated region
        $region126: #{tpu_custom_call.1} parent=96 // pred_check
          %p1412 = pneg %p309
        $region127: #{tpu_custom_call.1} parent=96 // pred_check_branch
          %1414 = sbr.rel (%p1412) target = $region129
        $region128: #{tpu_custom_call.1} parent=96 // pred_region
          %1415 = dma.done [#allocation7], 256
        $region129: #{tpu_custom_call.1} parent=96 // pred_fallthru
          _
        // Predicated region
        $region130: #{tpu_custom_call.1} parent=96 // pred_check
          %p1416 = pneg %p335
        $region131: #{tpu_custom_call.1} parent=96 // pred_check_branch
          %1418 = sbr.rel (%p1416) target = $region133
        $region132: #{tpu_custom_call.1} parent=96 // pred_region
          %p1419 = scmp.lt.s32.totalorder %s30, 0
          %s1420 = scalar_select %p1419, %s30, 0
          %s1421 = smul.addr %s1420, 16
          %s1422 = smul.addr %s1421, 8
          %s1423 = scalar_lea.vmem %s12, %s1422
        $region133: #{tpu_custom_call.1} parent=96 // pred_fallthru
          _
      $region97: #{tpu_custom_call.1} parent=5 // pred_fallthru
        _
      %p1424 = scmp.le.s32.totalorder 2, %s21
      // Predicated region
      $region134: #{tpu_custom_call.1} parent=5 // pred_check
        %p1425 = pneg %p1424
      $region135: #{tpu_custom_call.1} parent=5 // pred_check_branch
        %1427 = sbr.rel (%p1425) target = $region137
      $region136: #{tpu_custom_call.1} parent=5 // pred_region
        %s1428 = ssub.s32 %s21, 2
      $region137: #{tpu_custom_call.1} parent=5 // pred_fallthru
        _
    $region6: #{tpu_custom_call.1} parent=1 // loop_footer
      %s25 = sadd.s32 1, %s21
    $region7: #{tpu_custom_call.1} parent=1 // loop_footer_branch
      %20 = sbr.rel target = $region3
    $region8: #{tpu_custom_call.1} parent=1 // loop_exit
      _
    %1429 = vsyncpa [#allocation5], 1
    %s1430 = scalar_lea.sflag [#allocation5], 1
    %1431 = vsyncpa %s1430, 1
    %1432 = vsyncpa [#allocation7], 1

</llo_original>
